<compile_context>
chip_gen: v7x
topology: tpu7x:2x2x1
jax: 0.10.0
libtpu: 0.0.40
codegen_flags: <defaults>
</compile_context>

<pallas_src>
import numpy as np
import jax
import jax.numpy as jnp
from jax import lax
from jax.experimental import pallas as pl
from jax.experimental.pallas import tpu as pltpu


# ----------------------------- Pallas kernel ------------------------------- #

def _bce_with_logits(x, y):
    # Numerically stable elementwise BCE-with-logits (same formula torch uses):
    #   max(x, 0) - x*y + log(1 + exp(-|x|))
    return jnp.maximum(x, 0.0) - x * y + jnp.log1p(jnp.exp(-jnp.abs(x)))


def _make_kernel(cast_inputs_to_f32: bool):
    def inference_kernel(x_ref, w_ref, b_ref, lab_ref, pred_ref, loss_ref):
        # x_ref   : (TP, H)     bf16      -- TP flattened (batch * L * L) positions
        # w_ref   : (8, H)      bf16/f32  -- rows 0/1 = w_S / w_E, rest zero padding
        # b_ref   : (2, 1)      f32       -- [b_S, b_E]
        # lab_ref : (2, TP)     f32       -- row 0 = labels_S, row 1 = labels_E
        # pred_ref: (2, TP)     f32       -- sigmoid(logit) * mask  (S, E), lane-dense
        # loss_ref: (1, 8, 128) f32       -- sublane 0 = S partial, sublane 1 = E partial
        x = x_ref[...]
        w = w_ref[...]
        if cast_inputs_to_f32:
            # Portable f32 path (non-TPU backends have no bf16xbf16=f32 dot).
            x = x.astype(jnp.float32)

        # Lane-dense logits straight off the MXU: (8,H) x (TP,H), contract on H
        # -> [8, TP].  No lane-sparse [TP,8] intermediate, no XLU transpose.
        logits = lax.dot_general(
            w, x,
            dimension_numbers=(((1,), (1,)), ((), ())),
            preferred_element_type=jnp.float32)                       # [8, TP]
        lg = logits[0:2, :] + b_ref[...]                              # [2, TP]

        lab = lab_ref[...]                                            # [2, TP]
        # NOTE: PyTorch uses (table_labels_S >= 0) as the BCE weight AND the
        # prediction mask for BOTH S and E -- reproduced exactly here.
        mask = (lab[0:1, :] >= 0.0).astype(jnp.float32)               # [1, TP]

        # Single EUP exp per element, shared by the BCE log1p term and sigmoid.
        e = jnp.exp(-jnp.abs(lg))                                     # [2, TP]
        bce = jnp.maximum(lg, 0.0) - lg * lab + jnp.log1p(e)          # stable BCE
        wl = mask * bce                                               # [2, TP]

        inv = 1.0 / (1.0 + e)
        sig = jnp.where(lg >= 0.0, inv, e * inv)                      # sigmoid(lg)
        pred_ref[...] = sig * mask                                    # lane-dense store

        loss_s = jnp.sum(wl[0:1, :])
        loss_e = jnp.sum(wl[1:2, :])
        srow = lax.broadcasted_iota(jnp.int32, loss_ref.shape, 1)     # sublane index
        loss_ref[...] = jnp.where(srow == 0, loss_s,
                                  jnp.where(srow == 1, loss_e, 0.0))
    return inference_kernel


def _round_up(n, m):
    return ((n + m - 1) // m) * m


def _inference_core(x, w8, bias, labels, tp, *, cast_inputs_to_f32):
    # x:      (n_pad, H)   bf16
    # w8:     (8, H)       bf16 (TPU) / f32 (fallback)
    # bias:   (2, 1)       f32
    # labels: (2, n_pad)   f32
    n_pad, H = x.shape
    nt = pl.cdiv(n_pad, tp)
    grid_spec = pltpu.PrefetchScalarGridSpec(
        num_scalar_prefetch=0,
        grid=(nt,),
        in_specs=[
            pl.BlockSpec((tp, H), lambda t: (t, 0)),         # table tile
            pl.BlockSpec((8, H), lambda t: (0, 0)),          # packed weights (resident)
            pl.BlockSpec((2, 1), lambda t: (0, 0)),          # biases
            pl.BlockSpec((2, tp), lambda t: (0, t)),         # packed labels (S, E)
        ],
        out_specs=[
            pl.BlockSpec((2, tp), lambda t: (0, t)),         # packed preds, lane-dense
            pl.BlockSpec((1, 8, 128), lambda t: (t, 0, 0)),  # per-tile loss partials
        ],
    )
    return pl.pallas_call(
        _make_kernel(cast_inputs_to_f32),
        grid_spec=grid_spec,
        out_shape=(
            jax.ShapeDtypeStruct((2, n_pad), jnp.float32),
            jax.ShapeDtypeStruct((nt, 8, 128), jnp.float32),
        ),
        compiler_params=pltpu.CompilerParams(
            # Per-tile partials -> no cross-step carry -> axis is truly parallel
            # (lets v7x shard tiles across both TensorCores).
            dimension_semantics=("parallel",),
            # ~25 MiB live at tp=8192 (bf16 path): above the 16/32 MiB scoped
            # defaults of v5e/v6e, safely below v7x's 64 MiB physical VMEM.
            vmem_limit_bytes=48 * 1024 * 1024,
        ),
    )(x, w8, bias, labels)


# ------------------------------ JAX glue ------------------------------------ #

class Config:
    span_pruning = 0.3


def span_pruning(pred, z, attention_mask):
    # pred: [B, L, L] float, attention_mask: [B, L]
    # TODO(synk): the per-batch k-th-largest threshold selection has no clean
    # Pallas TPU primitive; done in plain JAX with lax.top_k (static bound)
    # instead of a full descending sort over L*L.
    B, L, _ = pred.shape
    am_sum = attention_mask.sum(axis=1)
    mask_length = am_sum - 2                                             # [B]
    length = ((am_sum - 2).astype(jnp.float32) * z).astype(jnp.int32)    # .long() trunc
    length = jnp.maximum(length, 5)
    length = jnp.minimum(length, mask_length * mask_length)
    # Static upper bound on `length`: am_sum <= L, so length <= max(5, floor((L-2)*z)).
    k_static = int(min(L * L, max(5, int(np.floor((L - 2) * z)))))
    topk_vals, _ = lax.top_k(pred.reshape(B, -1), k_static)              # descending
    idx = jnp.clip(length - 1, 0, k_static - 1)
    topkth = topk_vals[jnp.arange(B), idx]
    return pred >= topkth.reshape(B, 1, 1)


def inference_forward(params, config, table, attention_mask,
                      table_labels_S, table_labels_E, *, tile_cap=8192):
    B, L, _, H = table.shape
    N = B * L * L

    # bf16 x bf16 -> f32 MXU dot on TPU; f32 fallback elsewhere (e.g. interpret
    # mode on CPU, whose dot thunk has no bf16 path).
    on_tpu = jax.default_backend() == "tpu"
    w_dtype = jnp.bfloat16 if on_tpu else jnp.float32

    # Free reshape only (no transpose); bf16 table halves HBM read traffic.
    x = table.reshape(N, H)
    if x.dtype != jnp.bfloat16:
        x = x.astype(jnp.bfloat16)

    w8 = jnp.zeros((8, H), w_dtype)
    w8 = w8.at[0, :].set(params["w_S"].astype(w_dtype))
    w8 = w8.at[1, :].set(params["w_E"].astype(w_dtype))
    bias = jnp.stack([params["b_S"], params["b_E"]]).astype(jnp.float32).reshape(2, 1)

    labels = jnp.stack(
        [table_labels_S.reshape(N), table_labels_E.reshape(N)], axis=0
    ).astype(jnp.float32)                                                 # (2, N)

    # Tile: multiple of 128, capped at tile_cap.  Pad N up to a whole number of
    # tiles; padded labels = -1 so the (>=0) mask zeroes both loss and preds.
    tp = min(int(tile_cap), _round_up(N, 128))
    tp = max(128, tp - tp % 128)
    n_pad = _round_up(N, tp)
    if n_pad != N:
        x = jnp.pad(x, ((0, n_pad - N), (0, 0)))
        labels = jnp.pad(labels, ((0, 0), (0, n_pad - N)), constant_values=-1.0)

    pred, loss_parts = _inference_core(x, w8, bias, labels, tp,
                                       cast_inputs_to_f32=not on_tpu)

    denom = float(N)   # BCEWithLogitsLoss(weight=...) 'mean' divides by numel
    outputs = {}
    outputs["table_loss_S"] = loss_parts[:, 0, 0].sum() / denom
    outputs["table_loss_E"] = loss_parts[:, 1, 0].sum() / denom

    S_pred = pred[0, :N].reshape(B, L, L)
    E_pred = pred[1, :N].reshape(B, L, L)

    if config.span_pruning != 0:
        table_predict_S = span_pruning(S_pred, config.span_pruning, attention_mask)
        table_predict_E = span_pruning(E_pred, config.span_pruning, attention_mask)
    else:
        table_predict_S = S_pred > 0.5
        table_predict_E = E_pred > 0.5

    outputs["table_predict_S"] = table_predict_S
    outputs["table_predict_E"] = table_predict_E
    outputs["table_labels_S"] = table_labels_S
    outputs["table_labels_E"] = table_labels_E
    return outputs


# ------------------------------- main --------------------------------------- #

if __name__ == "__main__":
    B, L, H = 2, 16, 768          # seq=16 -> L*L=256, hidden=768 as in the module

    key = jax.random.PRNGKey(0)
    k_tab, k_ws, k_we, k_bs, k_be, k_ls, k_le = jax.random.split(key, 7)

    # "Producer" emits the table directly in bf16 (no extra cast pass over HBM).
    table = (jax.random.normal(k_tab, (B, L, L, H), dtype=jnp.float32) * 0.05
             ).astype(jnp.bfloat16)
    # deterministic "Linear(768, 1)" params (synthetic, not a checkpoint)
    params = {
        "w_S": jax.random.normal(k_ws, (H,), dtype=jnp.float32) * 0.02,
        "w_E": jax.random.normal(k_we, (H,), dtype=jnp.float32) * 0.02,
        "b_S": jax.random.normal(k_bs, (), dtype=jnp.float32) * 0.02,
        "b_E": jax.random.normal(k_be, (), dtype=jnp.float32) * 0.02,
    }
    # attention mask: valid prefix lengths [12, 16]
    lens = jnp.array([12, 16], dtype=jnp.int32)
    attention_mask = (jnp.arange(L)[None, :] < lens[:, None]).astype(jnp.int32)
    # labels in {-1, 0, 1} (-1 => ignored by the >=0 weight/mask)
    table_labels_S = jax.random.randint(k_ls, (B, L, L), -1, 2, dtype=jnp.int32)
    table_labels_E = jax.random.randint(k_le, (B, L, L), -1, 2, dtype=jnp.int32)

    cfg = Config()
    outputs = inference_forward(params, cfg, table, attention_mask,
                                table_labels_S, table_labels_E)
    jax.block_until_ready(outputs)

    # Pure-JAX reference check of the kernel hot path (same quantized table /
    # weights, so only accumulation order differs from the kernel).
    tab_f32 = table.astype(jnp.float32)
    ref_w_dtype = jnp.bfloat16 if jax.default_backend() == "tpu" else jnp.float32

    def _ref_loss(wname, bname, labels_tgt):
        w = params[wname].astype(ref_w_dtype).astype(jnp.float32)
        logits = jnp.einsum("blkh,h->blk", tab_f32, w,
                            precision=lax.Precision.HIGHEST) + params[bname]
        m = (table_labels_S >= 0).astype(jnp.float32)
        return jnp.mean(m * _bce_with_logits(logits, labels_tgt.astype(jnp.float32)))

    ref_S = _ref_loss("w_S", "b_S", table_labels_S)
    ref_E = _ref_loss("w_E", "b_E", table_labels_E)
    np.testing.assert_allclose(np.asarray(outputs["table_loss_S"]), np.asarray(ref_S),
                               rtol=2e-2, atol=2e-2)
    np.testing.assert_allclose(np.asarray(outputs["table_loss_E"]), np.asarray(ref_E),
                               rtol=2e-2, atol=2e-2)
    assert outputs["table_predict_S"].shape == (B, L, L)
    assert outputs["table_predict_E"].shape == (B, L, L)
    assert outputs["table_predict_S"].dtype == jnp.bool_
    assert outputs["table_predict_E"].dtype == jnp.bool_

    print("KERNEL_OK")
</pallas_src>

<mosaic_0001>
module attributes {stable_mosaic.version = 11 : i64} {
  func.func @inference_kernel(%arg0: i32, %arg1: memref<512x768xbf16, #tpu.memory_space<vmem>>, %arg2: memref<8x768xf32, #tpu.memory_space<vmem>>, %arg3: memref<2x1xf32, #tpu.memory_space<vmem>>, %arg4: memref<2x512xf32, #tpu.memory_space<vmem>>, %arg5: memref<2x512xf32, #tpu.memory_space<vmem>>, %arg6: memref<1x8x128xf32, #tpu.memory_space<vmem>>) attributes {dimension_semantics = [#tpu.dimension_semantics<parallel>], iteration_bounds = array<i64: 1>, scalar_prefetch = 0 : i64, scratch_operands = 0 : i64, tpu.core_type = #tpu.core_type<tc>, window_params = [{transform_indices = @transform_0, window_bounds = array<i64: 512, 768>}, {pipeline_mode = #tpu.pipeline_mode<synchronous>, transform_indices = @transform_1, window_bounds = array<i64: 8, 768>}, {pipeline_mode = #tpu.pipeline_mode<synchronous>, transform_indices = @transform_2, window_bounds = array<i64: 2, 1>}, {transform_indices = @transform_3, window_bounds = array<i64: 2, 512>}, {transform_indices = @transform_4, window_bounds = array<i64: 2, 512>}, {transform_indices = @transform_5, window_bounds = array<i64: 1, 8, 128>}]} {
    %c0 = arith.constant 0 : index
    %c0_0 = arith.constant 0 : index
    %0 = vector.load %arg1[%c0, %c0_0] : memref<512x768xbf16, #tpu.memory_space<vmem>>, vector<512x768xbf16>
    %c0_1 = arith.constant 0 : index
    %c0_2 = arith.constant 0 : index
    %1 = vector.load %arg2[%c0_1, %c0_2] : memref<8x768xf32, #tpu.memory_space<vmem>>, vector<8x768xf32>
    %2 = arith.extf %0 : vector<512x768xbf16> to vector<512x768xf32>
    %cst = arith.constant dense<0.000000e+00> : vector<8x512xf32>
    %3 = tpu.matmul %1, %2, %cst {dimension_numbers = #tpu.dot_dimension_numbers<[1], [1], [0], [0], [0, 0, 1, 0], [], []>} : vector<8x768xf32>, vector<512x768xf32>, vector<8x512xf32> -> vector<8x512xf32>
    %4 = vector.extract_strided_slice %3 {offsets = [0, 0], sizes = [2, 512], strides = [1, 1]} : vector<8x512xf32> to vector<2x512xf32>
    %c0_3 = arith.constant 0 : index
    %c0_4 = arith.constant 0 : index
    %5 = vector.load %arg3[%c0_3, %c0_4] : memref<2x1xf32, #tpu.memory_space<vmem>>, vector<2x1xf32>
    %6 = vector.broadcast %5 : vector<2x1xf32> to vector<2x512xf32>
    %7 = arith.addf %4, %6 : vector<2x512xf32>
    %c0_5 = arith.constant 0 : index
    %c0_6 = arith.constant 0 : index
    %8 = vector.load %arg4[%c0_5, %c0_6] : memref<2x512xf32, #tpu.memory_space<vmem>>, vector<2x512xf32>
    %9 = vector.extract_strided_slice %8 {offsets = [0, 0], sizes = [1, 512], strides = [1, 1]} : vector<2x512xf32> to vector<1x512xf32>
    %cst_7 = arith.constant 0.000000e+00 : f32
    %10 = vector.broadcast %cst_7 : f32 to vector<1x512xf32>
    %11 = arith.cmpf oge, %9, %10 : vector<1x512xf32>
    %12 = arith.extui %11 : vector<1x512xi1> to vector<1x512xi32>
    %13 = arith.sitofp %12 : vector<1x512xi32> to vector<1x512xf32>
    %14 = math.absf %7 : vector<2x512xf32>
    %cst_8 = arith.constant 0.000000e+00 : f32
    %15 = vector.broadcast %cst_8 : f32 to vector<2x512xf32>
    %16 = arith.subf %15, %14 : vector<2x512xf32>
    %17 = math.exp %16 : vector<2x512xf32>
    %cst_9 = arith.constant 0.000000e+00 : f32
    %18 = vector.broadcast %cst_9 : f32 to vector<2x512xf32>
    %19 = arith.maximumf %7, %18 : vector<2x512xf32>
    %20 = arith.mulf %7, %8 : vector<2x512xf32>
    %21 = arith.subf %19, %20 : vector<2x512xf32>
    %22 = math.log1p %17 : vector<2x512xf32>
    %23 = arith.addf %21, %22 : vector<2x512xf32>
    %24 = vector.broadcast %13 : vector<1x512xf32> to vector<2x512xf32>
    %25 = arith.mulf %24, %23 : vector<2x512xf32>
    %cst_10 = arith.constant 1.000000e+00 : f32
    %26 = vector.broadcast %cst_10 : f32 to vector<2x512xf32>
    %27 = arith.addf %26, %17 : vector<2x512xf32>
    %cst_11 = arith.constant 1.000000e+00 : f32
    %28 = vector.broadcast %cst_11 : f32 to vector<2x512xf32>
    %29 = arith.divf %28, %27 : vector<2x512xf32>
    %cst_12 = arith.constant 0.000000e+00 : f32
    %30 = vector.broadcast %cst_12 : f32 to vector<2x512xf32>
    %31 = arith.cmpf oge, %7, %30 : vector<2x512xf32>
    %32 = arith.mulf %17, %29 : vector<2x512xf32>
    %33 = arith.select %31, %29, %32 : vector<2x512xi1>, vector<2x512xf32>
    %34 = vector.broadcast %13 : vector<1x512xf32> to vector<2x512xf32>
    %35 = arith.mulf %33, %34 : vector<2x512xf32>
    %c0_13 = arith.constant 0 : index
    %c0_14 = arith.constant 0 : index
    %36 = vector.load %arg5[%c0_13, %c0_14] : memref<2x512xf32, #tpu.memory_space<vmem>>, vector<2x512xf32>
    tpu.vector_store %arg5[%c0_13, %c0_14], %35 {strides = array<i32>} : memref<2x512xf32, #tpu.memory_space<vmem>>, vector<2x512xf32>,
    %37 = vector.extract_strided_slice %25 {offsets = [0, 0], sizes = [1, 512], strides = [1, 1]} : vector<2x512xf32> to vector<1x512xf32>
    %38 = vector.shape_cast %37 : vector<1x512xf32> to vector<1x1x512xf32>
    %cst_15 = arith.constant dense<0.000000e+00> : vector<1xf32>
    %39 = vector.multi_reduction <add>, %38, %cst_15 [1, 2] : vector<1x1x512xf32> to vector<1xf32>
    %40 = vector.shape_cast %39 : vector<1xf32> to vector<1x1x1xf32>
    %41 = vector.extract %40[0, 0, 0] : f32 from vector<1x1x1xf32>
    %42 = vector.extract_strided_slice %25 {offsets = [1, 0], sizes = [1, 512], strides = [1, 1]} : vector<2x512xf32> to vector<1x512xf32>
    %43 = vector.shape_cast %42 : vector<1x512xf32> to vector<1x1x512xf32>
    %cst_16 = arith.constant dense<0.000000e+00> : vector<1xf32>
    %44 = vector.multi_reduction <add>, %43, %cst_16 [1, 2] : vector<1x1x512xf32> to vector<1xf32>
    %45 = vector.shape_cast %44 : vector<1xf32> to vector<1x1x1xf32>
    %46 = vector.extract %45[0, 0, 0] : f32 from vector<1x1x1xf32>
    %47 = tpu.iota {dimensions = array<i32: 1>} : vector<1x8x128xi32>
    %c0_i32 = arith.constant 0 : i32
    %48 = vector.broadcast %c0_i32 : i32 to vector<1x8x128xi32>
    %49 = arith.cmpi eq, %47, %48 : vector<1x8x128xi32>
    %c1_i32 = arith.constant 1 : i32
    %50 = vector.broadcast %c1_i32 : i32 to vector<1x8x128xi32>
    %51 = arith.cmpi eq, %47, %50 : vector<1x8x128xi32>
    %cst_17 = arith.constant 0.000000e+00 : f32
    %52 = vector.broadcast %46 : f32 to vector<1x8x128xf32>
    %53 = vector.broadcast %cst_17 : f32 to vector<1x8x128xf32>
    %54 = arith.select %51, %52, %53 : vector<1x8x128xi1>, vector<1x8x128xf32>
    %55 = vector.broadcast %41 : f32 to vector<1x8x128xf32>
    %56 = arith.select %49, %55, %54 : vector<1x8x128xi1>, vector<1x8x128xf32>
    %c0_18 = arith.constant 0 : index
    %c0_19 = arith.constant 0 : index
    %c0_20 = arith.constant 0 : index
    %57 = vector.load %arg6[%c0_18, %c0_19, %c0_20] : memref<1x8x128xf32, #tpu.memory_space<vmem>>, vector<1x8x128xf32>
    tpu.vector_store %arg6[%c0_18, %c0_19, %c0_20], %56 {strides = array<i32>} : memref<1x8x128xf32, #tpu.memory_space<vmem>>, vector<1x8x128xf32>,
    return
  }
  func.func @transform_0(%arg0: i32) -> (i32, i32) {
    %c0_i32 = arith.constant 0 : i32
    %c0_i32_0 = arith.constant 0 : i32
    return %arg0, %c0_i32 : i32, i32
  }
  func.func @transform_1(%arg0: i32) -> (i32, i32) {
    %c0_i32 = arith.constant 0 : i32
    %c0_i32_0 = arith.constant 0 : i32
    %c0_i32_1 = arith.constant 0 : i32
    return %c0_i32, %c0_i32_0 : i32, i32
  }
  func.func @transform_2(%arg0: i32) -> (i32, i32) {
    %c0_i32 = arith.constant 0 : i32
    %c0_i32_0 = arith.constant 0 : i32
    %c0_i32_1 = arith.constant 0 : i32
    return %c0_i32, %c0_i32_0 : i32, i32
  }
  func.func @transform_3(%arg0: i32) -> (i32, i32) {
    %c0_i32 = arith.constant 0 : i32
    %c0_i32_0 = arith.constant 0 : i32
    return %c0_i32, %arg0 : i32, i32
  }
  func.func @transform_4(%arg0: i32) -> (i32, i32) {
    %c0_i32 = arith.constant 0 : i32
    %c0_i32_0 = arith.constant 0 : i32
    return %c0_i32, %arg0 : i32, i32
  }
  func.func @transform_5(%arg0: i32) -> (i32, i32, i32) {
    %c0_i32 = arith.constant 0 : i32
    %c0_i32_0 = arith.constant 0 : i32
    %c0_i32_1 = arith.constant 0 : i32
    return %arg0, %c0_i32, %c0_i32_0 : i32, i32, i32
  }
}

</mosaic_0001>

<llo_original>
// kernel: tpu_custom_call.1
$region0: #{tpu_custom_call.1}
  #allocation0 [shape = 'u32[]', space=smem, size = 0x4, offset = 0x4, fixed_abs, tag = 'smem constant byte address 0x4 - core index']
  #allocation1 [shape = 'u32[144,128]{1,0:T(1,128)}', space=vmem, size = 0x12000, scoped, tag = 'internal scratch']
  %s0 = inlined_call_operand.hbm [shape: bf16[512,768], index: 0, kind: input, shape index: {}]
  %s1 = inlined_call_operand.hbm [shape: f32[8,768], index: 1, kind: input, shape index: {}]
  %s2 = inlined_call_operand.vmem [shape: f32[2,1], index: 2, kind: input, shape index: {}]
  %s3 = inlined_call_operand.vmem [shape: f32[2,512], index: 3, kind: input, shape index: {}]
  %s4 = inlined_call_operand.hbm [shape: f32[2,512], index: 4, kind: output, shape index: {0}]
  %s5 = inlined_call_operand.hbm [shape: f32[1,8,128], index: 5, kind: output, shape index: {1}]
  %6 = xla_tuple %s4, %s5
  %s7 = sld [smem:[#allocation0]]
  $region42: #{tpu_custom_call.1} parent=0
    _
  %s9 = ssub.s32 1, %s7
  %s10 = scalar_select 0, %s9, %s7
  $region1: #{tpu_custom_call.1} parent=0
    #allocation2 [shape = 'u8[786432]{0}', space=vmem, size = 0xc0000, scoped, tag = 'input window, operand 0, single buffered']
    #allocation3 [shape = 's32[1]{0}', space=sflag, size = 0x4, scoped, tag = 'scoped memory for tpu_custom_call.1']
    #allocation4 [shape = 's32[1]{0}', space=sflag, size = 0x4, scoped, tag = 'scoped memory for tpu_custom_call.1']
    #allocation5 [shape = 'u8[24576]{0}', space=vmem, size = 0x6000, scoped, tag = 'input window, operand 1, single buffered']
    #allocation6 [shape = 's32[1]{0}', space=sflag, size = 0x4, scoped, tag = 'scoped memory for tpu_custom_call.1']
    #allocation7 [shape = 'u8[4096]{0}', space=vmem, size = 0x1000, scoped, tag = 'output window, operand 0, single buffered']
    #allocation8 [shape = 'u8[4096]{0}', space=vmem, size = 0x1000, scoped, tag = 'output window, operand 1, single buffered']
    #allocation9 [shape = 's32[1]{0}', space=sflag, size = 0x4, scoped, tag = 'scoped memory for tpu_custom_call.1']
    %11 = vsyncpa [#allocation3], 0
    %12 = vsyncpa [#allocation6], 0
    %13 = vsyncpa [#allocation4], 0
    %14 = vsyncpa [#allocation9], 0
    // Predicated region
    $region2: #{tpu_custom_call.1} parent=1 // pred_check
      _
    $region3: #{tpu_custom_call.1} parent=1 // pred_check_branch
      %16 = sbr.rel (0) target = $region5
    $region4: #{tpu_custom_call.1} parent=1 // pred_region
      %s18 = ssub.s32 24576, 24576
      %19 = vsyncadd [#allocation3], %s18
      %s20 = sshll.u32 [#allocation2], 4
      %s21 = int_to_ptr.vmem [resolvable:$true] %s20
      %26 = dma.hbm_to_vmem [thread:$0]  %s0, 24576, %s21, [#allocation3], 384, 384, 24
    $region5: #{tpu_custom_call.1} parent=1 // pred_fallthru
      _
    // Predicated region
    $region6: #{tpu_custom_call.1} parent=1 // pred_check
      _
    $region7: #{tpu_custom_call.1} parent=1 // pred_check_branch
      %28 = sbr.rel (0) target = $region9
    $region8: #{tpu_custom_call.1} parent=1 // pred_region
      %s30 = ssub.s32 768, 768
      %31 = vsyncadd [#allocation6], %s30
      %s33 = sshll.u32 [#allocation5], 4
      %s34 = int_to_ptr.vmem [resolvable:$true] %s33
      %36 = dma.hbm_to_vmem [thread:$0]  %s1, 768, %s34, [#allocation6]
    $region9: #{tpu_custom_call.1} parent=1 // pred_fallthru
      _
    // Predicated region
    $region10: #{tpu_custom_call.1} parent=1 // pred_check
      _
    $region11: #{tpu_custom_call.1} parent=1 // pred_check_branch
      %38 = sbr.rel (0) target = $region13
    $region12: #{tpu_custom_call.1} parent=1 // pred_region
      _
    $region13: #{tpu_custom_call.1} parent=1 // pred_fallthru
      _
    // Predicated region
    $region14: #{tpu_custom_call.1} parent=1 // pred_check
      _
    $region15: #{tpu_custom_call.1} parent=1 // pred_check_branch
      %40 = sbr.rel (0) target = $region17
    $region16: #{tpu_custom_call.1} parent=1 // pred_region
      _
    $region17: #{tpu_custom_call.1} parent=1 // pred_fallthru
      _
    // Predicated region
    $region18: #{tpu_custom_call.1} parent=1 // pred_check
      _
    $region19: #{tpu_custom_call.1} parent=1 // pred_check_branch
      %42 = sbr.rel (0) target = $region21
    $region20: #{tpu_custom_call.1} parent=1 // pred_region
      %43 = dma.done [#allocation3], 24576
    $region21: #{tpu_custom_call.1} parent=1 // pred_fallthru
      _
    // Predicated region
    $region22: #{tpu_custom_call.1} parent=1 // pred_check
      _
    $region23: #{tpu_custom_call.1} parent=1 // pred_check_branch
      %45 = sbr.rel (0) target = $region25
    $region24: #{tpu_custom_call.1} parent=1 // pred_region
      %46 = dma.done [#allocation6], 768
    $region25: #{tpu_custom_call.1} parent=1 // pred_fallthru
      _
    %v47 = vld [vmem:[#allocation2] sm:$0xff]
    %v48 = vld [vmem:[#allocation2 + $0x8] sm:$0xff]
    %v49 = vld [vmem:[#allocation2 + $0x10] sm:$0xff]
    %v50 = vld [vmem:[#allocation2 + $0x18] sm:$0xff]
    %v51 = vld [vmem:[#allocation2 + $0x20] sm:$0xff]
    %v52 = vld [vmem:[#allocation2 + $0x28] sm:$0xff]
    %v53 = vld [vmem:[#allocation2 + $0x30] sm:$0xff]
    %v54 = vld [vmem:[#allocation2 + $0x38] sm:$0xff]
    %v55 = vld [vmem:[#allocation2 + $0x40] sm:$0xff]
    %v56 = vld [vmem:[#allocation2 + $0x48] sm:$0xff]
    %v57 = vld [vmem:[#allocation2 + $0x50] sm:$0xff]
    %v58 = vld [vmem:[#allocation2 + $0x58] sm:$0xff]
    %v59 = vld [vmem:[#allocation2 + $0x60] sm:$0xff]
    %v60 = vld [vmem:[#allocation2 + $0x68] sm:$0xff]
    %v61 = vld [vmem:[#allocation2 + $0x70] sm:$0xff]
    %v62 = vld [vmem:[#allocation2 + $0x78] sm:$0xff]
    %v63 = vld [vmem:[#allocation2 + $0x80] sm:$0xff]
    %v64 = vld [vmem:[#allocation2 + $0x88] sm:$0xff]
    %v65 = vld [vmem:[#allocation2 + $0x90] sm:$0xff]
    %v66 = vld [vmem:[#allocation2 + $0x98] sm:$0xff]
    %v67 = vld [vmem:[#allocation2 + $0xa0] sm:$0xff]
    %v68 = vld [vmem:[#allocation2 + $0xa8] sm:$0xff]
    %v69 = vld [vmem:[#allocation2 + $0xb0] sm:$0xff]
    %v70 = vld [vmem:[#allocation2 + $0xb8] sm:$0xff]
    %v71 = vld [vmem:[#allocation2 + $0xc0] sm:$0xff]
    %v72 = vld [vmem:[#allocation2 + $0xc8] sm:$0xff]
    %v73 = vld [vmem:[#allocation2 + $0xd0] sm:$0xff]
    %v74 = vld [vmem:[#allocation2 + $0xd8] sm:$0xff]
    %v75 = vld [vmem:[#allocation2 + $0xe0] sm:$0xff]
    %v76 = vld [vmem:[#allocation2 + $0xe8] sm:$0xff]
    %v77 = vld [vmem:[#allocation2 + $0xf0] sm:$0xff]
    %v78 = vld [vmem:[#allocation2 + $0xf8] sm:$0xff]
    %v79 = vld [vmem:[#allocation2 + $0x100] sm:$0xff]
    %v80 = vld [vmem:[#allocation2 + $0x108] sm:$0xff]
    %v81 = vld [vmem:[#allocation2 + $0x110] sm:$0xff]
    %v82 = vld [vmem:[#allocation2 + $0x118] sm:$0xff]
    %v83 = vld [vmem:[#allocation2 + $0x120] sm:$0xff]
    %v84 = vld [vmem:[#allocation2 + $0x128] sm:$0xff]
    %v85 = vld [vmem:[#allocation2 + $0x130] sm:$0xff]
    %v86 = vld [vmem:[#allocation2 + $0x138] sm:$0xff]
    %v87 = vld [vmem:[#allocation2 + $0x140] sm:$0xff]
    %v88 = vld [vmem:[#allocation2 + $0x148] sm:$0xff]
    %v89 = vld [vmem:[#allocation2 + $0x150] sm:$0xff]
    %v90 = vld [vmem:[#allocation2 + $0x158] sm:$0xff]
    %v91 = vld [vmem:[#allocation2 + $0x160] sm:$0xff]
    %v92 = vld [vmem:[#allocation2 + $0x168] sm:$0xff]
    %v93 = vld [vmem:[#allocation2 + $0x170] sm:$0xff]
    %v94 = vld [vmem:[#allocation2 + $0x178] sm:$0xff]
    %v95 = vld [vmem:[#allocation2 + $0x180] sm:$0xff]
    %v96 = vld [vmem:[#allocation2 + $0x188] sm:$0xff]
    %v97 = vld [vmem:[#allocation2 + $0x190] sm:$0xff]
    %v98 = vld [vmem:[#allocation2 + $0x198] sm:$0xff]
    %v99 = vld [vmem:[#allocation2 + $0x1a0] sm:$0xff]
    %v100 = vld [vmem:[#allocation2 + $0x1a8] sm:$0xff]
    %v101 = vld [vmem:[#allocation2 + $0x1b0] sm:$0xff]
    %v102 = vld [vmem:[#allocation2 + $0x1b8] sm:$0xff]
    %v103 = vld [vmem:[#allocation2 + $0x1c0] sm:$0xff]
    %v104 = vld [vmem:[#allocation2 + $0x1c8] sm:$0xff]
    %v105 = vld [vmem:[#allocation2 + $0x1d0] sm:$0xff]
    %v106 = vld [vmem:[#allocation2 + $0x1d8] sm:$0xff]
    %v107 = vld [vmem:[#allocation2 + $0x1e0] sm:$0xff]
    %v108 = vld [vmem:[#allocation2 + $0x1e8] sm:$0xff]
    %v109 = vld [vmem:[#allocation2 + $0x1f0] sm:$0xff]
    %v110 = vld [vmem:[#allocation2 + $0x1f8] sm:$0xff]
    %v111 = vld [vmem:[#allocation2 + $0x200] sm:$0xff]
    %v112 = vld [vmem:[#allocation2 + $0x208] sm:$0xff]
    %v113 = vld [vmem:[#allocation2 + $0x210] sm:$0xff]
    %v114 = vld [vmem:[#allocation2 + $0x218] sm:$0xff]
    %v115 = vld [vmem:[#allocation2 + $0x220] sm:$0xff]
    %v116 = vld [vmem:[#allocation2 + $0x228] sm:$0xff]
    %v117 = vld [vmem:[#allocation2 + $0x230] sm:$0xff]
    %v118 = vld [vmem:[#allocation2 + $0x238] sm:$0xff]
    %v119 = vld [vmem:[#allocation2 + $0x240] sm:$0xff]
    %v120 = vld [vmem:[#allocation2 + $0x248] sm:$0xff]
    %v121 = vld [vmem:[#allocation2 + $0x250] sm:$0xff]
    %v122 = vld [vmem:[#allocation2 + $0x258] sm:$0xff]
    %v123 = vld [vmem:[#allocation2 + $0x260] sm:$0xff]
    %v124 = vld [vmem:[#allocation2 + $0x268] sm:$0xff]
    %v125 = vld [vmem:[#allocation2 + $0x270] sm:$0xff]
    %v126 = vld [vmem:[#allocation2 + $0x278] sm:$0xff]
    %v127 = vld [vmem:[#allocation2 + $0x280] sm:$0xff]
    %v128 = vld [vmem:[#allocation2 + $0x288] sm:$0xff]
    %v129 = vld [vmem:[#allocation2 + $0x290] sm:$0xff]
    %v130 = vld [vmem:[#allocation2 + $0x298] sm:$0xff]
    %v131 = vld [vmem:[#allocation2 + $0x2a0] sm:$0xff]
    %v132 = vld [vmem:[#allocation2 + $0x2a8] sm:$0xff]
    %v133 = vld [vmem:[#allocation2 + $0x2b0] sm:$0xff]
    %v134 = vld [vmem:[#allocation2 + $0x2b8] sm:$0xff]
    %v135 = vld [vmem:[#allocation2 + $0x2c0] sm:$0xff]
    %v136 = vld [vmem:[#allocation2 + $0x2c8] sm:$0xff]
    %v137 = vld [vmem:[#allocation2 + $0x2d0] sm:$0xff]
    %v138 = vld [vmem:[#allocation2 + $0x2d8] sm:$0xff]
    %v139 = vld [vmem:[#allocation2 + $0x2e0] sm:$0xff]
    %v140 = vld [vmem:[#allocation2 + $0x2e8] sm:$0xff]
    %v141 = vld [vmem:[#allocation2 + $0x2f0] sm:$0xff]
    %v142 = vld [vmem:[#allocation2 + $0x2f8] sm:$0xff]
    %v143 = vld [vmem:[#allocation2 + $0x300] sm:$0xff]
    %v144 = vld [vmem:[#allocation2 + $0x308] sm:$0xff]
    %v145 = vld [vmem:[#allocation2 + $0x310] sm:$0xff]
    %v146 = vld [vmem:[#allocation2 + $0x318] sm:$0xff]
    %v147 = vld [vmem:[#allocation2 + $0x320] sm:$0xff]
    %v148 = vld [vmem:[#allocation2 + $0x328] sm:$0xff]
    %v149 = vld [vmem:[#allocation2 + $0x330] sm:$0xff]
    %v150 = vld [vmem:[#allocation2 + $0x338] sm:$0xff]
    %v151 = vld [vmem:[#allocation2 + $0x340] sm:$0xff]
    %v152 = vld [vmem:[#allocation2 + $0x348] sm:$0xff]
    %v153 = vld [vmem:[#allocation2 + $0x350] sm:$0xff]
    %v154 = vld [vmem:[#allocation2 + $0x358] sm:$0xff]
    %v155 = vld [vmem:[#allocation2 + $0x360] sm:$0xff]
    %v156 = vld [vmem:[#allocation2 + $0x368] sm:$0xff]
    %v157 = vld [vmem:[#allocation2 + $0x370] sm:$0xff]
    %v158 = vld [vmem:[#allocation2 + $0x378] sm:$0xff]
    %v159 = vld [vmem:[#allocation2 + $0x380] sm:$0xff]
    %v160 = vld [vmem:[#allocation2 + $0x388] sm:$0xff]
    %v161 = vld [vmem:[#allocation2 + $0x390] sm:$0xff]
    %v162 = vld [vmem:[#allocation2 + $0x398] sm:$0xff]
    %v163 = vld [vmem:[#allocation2 + $0x3a0] sm:$0xff]
    %v164 = vld [vmem:[#allocation2 + $0x3a8] sm:$0xff]
    %v165 = vld [vmem:[#allocation2 + $0x3b0] sm:$0xff]
    %v166 = vld [vmem:[#allocation2 + $0x3b8] sm:$0xff]
    %v167 = vld [vmem:[#allocation2 + $0x3c0] sm:$0xff]
    %v168 = vld [vmem:[#allocation2 + $0x3c8] sm:$0xff]
    %v169 = vld [vmem:[#allocation2 + $0x3d0] sm:$0xff]
    %v170 = vld [vmem:[#allocation2 + $0x3d8] sm:$0xff]
    %v171 = vld [vmem:[#allocation2 + $0x3e0] sm:$0xff]
    %v172 = vld [vmem:[#allocation2 + $0x3e8] sm:$0xff]
    %v173 = vld [vmem:[#allocation2 + $0x3f0] sm:$0xff]
    %v174 = vld [vmem:[#allocation2 + $0x3f8] sm:$0xff]
    %v175 = vld [vmem:[#allocation2 + $0x400] sm:$0xff]
    %v176 = vld [vmem:[#allocation2 + $0x408] sm:$0xff]
    %v177 = vld [vmem:[#allocation2 + $0x410] sm:$0xff]
    %v178 = vld [vmem:[#allocation2 + $0x418] sm:$0xff]
    %v179 = vld [vmem:[#allocation2 + $0x420] sm:$0xff]
    %v180 = vld [vmem:[#allocation2 + $0x428] sm:$0xff]
    %v181 = vld [vmem:[#allocation2 + $0x430] sm:$0xff]
    %v182 = vld [vmem:[#allocation2 + $0x438] sm:$0xff]
    %v183 = vld [vmem:[#allocation2 + $0x440] sm:$0xff]
    %v184 = vld [vmem:[#allocation2 + $0x448] sm:$0xff]
    %v185 = vld [vmem:[#allocation2 + $0x450] sm:$0xff]
    %v186 = vld [vmem:[#allocation2 + $0x458] sm:$0xff]
    %v187 = vld [vmem:[#allocation2 + $0x460] sm:$0xff]
    %v188 = vld [vmem:[#allocation2 + $0x468] sm:$0xff]
    %v189 = vld [vmem:[#allocation2 + $0x470] sm:$0xff]
    %v190 = vld [vmem:[#allocation2 + $0x478] sm:$0xff]
    %v191 = vld [vmem:[#allocation2 + $0x480] sm:$0xff]
    %v192 = vld [vmem:[#allocation2 + $0x488] sm:$0xff]
    %v193 = vld [vmem:[#allocation2 + $0x490] sm:$0xff]
    %v194 = vld [vmem:[#allocation2 + $0x498] sm:$0xff]
    %v195 = vld [vmem:[#allocation2 + $0x4a0] sm:$0xff]
    %v196 = vld [vmem:[#allocation2 + $0x4a8] sm:$0xff]
    %v197 = vld [vmem:[#allocation2 + $0x4b0] sm:$0xff]
    %v198 = vld [vmem:[#allocation2 + $0x4b8] sm:$0xff]
    %v199 = vld [vmem:[#allocation2 + $0x4c0] sm:$0xff]
    %v200 = vld [vmem:[#allocation2 + $0x4c8] sm:$0xff]
    %v201 = vld [vmem:[#allocation2 + $0x4d0] sm:$0xff]
    %v202 = vld [vmem:[#allocation2 + $0x4d8] sm:$0xff]
    %v203 = vld [vmem:[#allocation2 + $0x4e0] sm:$0xff]
    %v204 = vld [vmem:[#allocation2 + $0x4e8] sm:$0xff]
    %v205 = vld [vmem:[#allocation2 + $0x4f0] sm:$0xff]
    %v206 = vld [vmem:[#allocation2 + $0x4f8] sm:$0xff]
    %v207 = vld [vmem:[#allocation2 + $0x500] sm:$0xff]
    %v208 = vld [vmem:[#allocation2 + $0x508] sm:$0xff]
    %v209 = vld [vmem:[#allocation2 + $0x510] sm:$0xff]
    %v210 = vld [vmem:[#allocation2 + $0x518] sm:$0xff]
    %v211 = vld [vmem:[#allocation2 + $0x520] sm:$0xff]
    %v212 = vld [vmem:[#allocation2 + $0x528] sm:$0xff]
    %v213 = vld [vmem:[#allocation2 + $0x530] sm:$0xff]
    %v214 = vld [vmem:[#allocation2 + $0x538] sm:$0xff]
    %v215 = vld [vmem:[#allocation2 + $0x540] sm:$0xff]
    %v216 = vld [vmem:[#allocation2 + $0x548] sm:$0xff]
    %v217 = vld [vmem:[#allocation2 + $0x550] sm:$0xff]
    %v218 = vld [vmem:[#allocation2 + $0x558] sm:$0xff]
    %v219 = vld [vmem:[#allocation2 + $0x560] sm:$0xff]
    %v220 = vld [vmem:[#allocation2 + $0x568] sm:$0xff]
    %v221 = vld [vmem:[#allocation2 + $0x570] sm:$0xff]
    %v222 = vld [vmem:[#allocation2 + $0x578] sm:$0xff]
    %v223 = vld [vmem:[#allocation2 + $0x580] sm:$0xff]
    %v224 = vld [vmem:[#allocation2 + $0x588] sm:$0xff]
    %v225 = vld [vmem:[#allocation2 + $0x590] sm:$0xff]
    %v226 = vld [vmem:[#allocation2 + $0x598] sm:$0xff]
    %v227 = vld [vmem:[#allocation2 + $0x5a0] sm:$0xff]
    %v228 = vld [vmem:[#allocation2 + $0x5a8] sm:$0xff]
    %v229 = vld [vmem:[#allocation2 + $0x5b0] sm:$0xff]
    %v230 = vld [vmem:[#allocation2 + $0x5b8] sm:$0xff]
    %v231 = vld [vmem:[#allocation2 + $0x5c0] sm:$0xff]
    %v232 = vld [vmem:[#allocation2 + $0x5c8] sm:$0xff]
    %v233 = vld [vmem:[#allocation2 + $0x5d0] sm:$0xff]
    %v234 = vld [vmem:[#allocation2 + $0x5d8] sm:$0xff]
    %v235 = vld [vmem:[#allocation2 + $0x5e0] sm:$0xff]
    %v236 = vld [vmem:[#allocation2 + $0x5e8] sm:$0xff]
    %v237 = vld [vmem:[#allocation2 + $0x5f0] sm:$0xff]
    %v238 = vld [vmem:[#allocation2 + $0x5f8] sm:$0xff]
    %v239 = vld [vmem:[#allocation5] sm:$0xff]
    %v240 = vld [vmem:[#allocation5 + $0x8] sm:$0xff]
    %v241 = vld [vmem:[#allocation5 + $0x10] sm:$0xff]
    %v242 = vld [vmem:[#allocation5 + $0x18] sm:$0xff]
    %v243 = vld [vmem:[#allocation5 + $0x20] sm:$0xff]
    %v244 = vld [vmem:[#allocation5 + $0x28] sm:$0xff]
    %v245 = vunpack.c.l.bf16 %v47
    %v246 = vunpack.c.h.bf16 %v47
    %v247 = vunpack.c.l.bf16 %v48
    %v248 = vunpack.c.h.bf16 %v48
    %v249 = vunpack.c.l.bf16 %v49
    %v250 = vunpack.c.h.bf16 %v49
    %v251 = vunpack.c.l.bf16 %v50
    %v252 = vunpack.c.h.bf16 %v50
    %v253 = vunpack.c.l.bf16 %v51
    %v254 = vunpack.c.h.bf16 %v51
    %v255 = vunpack.c.l.bf16 %v52
    %v256 = vunpack.c.h.bf16 %v52
    %v257 = vunpack.c.l.bf16 %v53
    %v258 = vunpack.c.h.bf16 %v53
    %v259 = vunpack.c.l.bf16 %v54
    %v260 = vunpack.c.h.bf16 %v54
    %v261 = vunpack.c.l.bf16 %v55
    %v262 = vunpack.c.h.bf16 %v55
    %v263 = vunpack.c.l.bf16 %v56
    %v264 = vunpack.c.h.bf16 %v56
    %v265 = vunpack.c.l.bf16 %v57
    %v266 = vunpack.c.h.bf16 %v57
    %v267 = vunpack.c.l.bf16 %v58
    %v268 = vunpack.c.h.bf16 %v58
    %v269 = vunpack.c.l.bf16 %v59
    %v270 = vunpack.c.h.bf16 %v59
    %v271 = vunpack.c.l.bf16 %v60
    %v272 = vunpack.c.h.bf16 %v60
    %v273 = vunpack.c.l.bf16 %v61
    %v274 = vunpack.c.h.bf16 %v61
    %v275 = vunpack.c.l.bf16 %v62
    %v276 = vunpack.c.h.bf16 %v62
    %v277 = vunpack.c.l.bf16 %v63
    %v278 = vunpack.c.h.bf16 %v63
    %v279 = vunpack.c.l.bf16 %v64
    %v280 = vunpack.c.h.bf16 %v64
    %v281 = vunpack.c.l.bf16 %v65
    %v282 = vunpack.c.h.bf16 %v65
    %v283 = vunpack.c.l.bf16 %v66
    %v284 = vunpack.c.h.bf16 %v66
    %v285 = vunpack.c.l.bf16 %v67
    %v286 = vunpack.c.h.bf16 %v67
    %v287 = vunpack.c.l.bf16 %v68
    %v288 = vunpack.c.h.bf16 %v68
    %v289 = vunpack.c.l.bf16 %v69
    %v290 = vunpack.c.h.bf16 %v69
    %v291 = vunpack.c.l.bf16 %v70
    %v292 = vunpack.c.h.bf16 %v70
    %v293 = vunpack.c.l.bf16 %v71
    %v294 = vunpack.c.h.bf16 %v71
    %v295 = vunpack.c.l.bf16 %v72
    %v296 = vunpack.c.h.bf16 %v72
    %v297 = vunpack.c.l.bf16 %v73
    %v298 = vunpack.c.h.bf16 %v73
    %v299 = vunpack.c.l.bf16 %v74
    %v300 = vunpack.c.h.bf16 %v74
    %v301 = vunpack.c.l.bf16 %v75
    %v302 = vunpack.c.h.bf16 %v75
    %v303 = vunpack.c.l.bf16 %v76
    %v304 = vunpack.c.h.bf16 %v76
    %v305 = vunpack.c.l.bf16 %v77
    %v306 = vunpack.c.h.bf16 %v77
    %v307 = vunpack.c.l.bf16 %v78
    %v308 = vunpack.c.h.bf16 %v78
    %v309 = vunpack.c.l.bf16 %v79
    %v310 = vunpack.c.h.bf16 %v79
    %v311 = vunpack.c.l.bf16 %v80
    %v312 = vunpack.c.h.bf16 %v80
    %v313 = vunpack.c.l.bf16 %v81
    %v314 = vunpack.c.h.bf16 %v81
    %v315 = vunpack.c.l.bf16 %v82
    %v316 = vunpack.c.h.bf16 %v82
    %v317 = vunpack.c.l.bf16 %v83
    %v318 = vunpack.c.h.bf16 %v83
    %v319 = vunpack.c.l.bf16 %v84
    %v320 = vunpack.c.h.bf16 %v84
    %v321 = vunpack.c.l.bf16 %v85
    %v322 = vunpack.c.h.bf16 %v85
    %v323 = vunpack.c.l.bf16 %v86
    %v324 = vunpack.c.h.bf16 %v86
    %v325 = vunpack.c.l.bf16 %v87
    %v326 = vunpack.c.h.bf16 %v87
    %v327 = vunpack.c.l.bf16 %v88
    %v328 = vunpack.c.h.bf16 %v88
    %v329 = vunpack.c.l.bf16 %v89
    %v330 = vunpack.c.h.bf16 %v89
    %v331 = vunpack.c.l.bf16 %v90
    %v332 = vunpack.c.h.bf16 %v90
    %v333 = vunpack.c.l.bf16 %v91
    %v334 = vunpack.c.h.bf16 %v91
    %v335 = vunpack.c.l.bf16 %v92
    %v336 = vunpack.c.h.bf16 %v92
    %v337 = vunpack.c.l.bf16 %v93
    %v338 = vunpack.c.h.bf16 %v93
    %v339 = vunpack.c.l.bf16 %v94
    %v340 = vunpack.c.h.bf16 %v94
    %v341 = vunpack.c.l.bf16 %v95
    %v342 = vunpack.c.h.bf16 %v95
    %v343 = vunpack.c.l.bf16 %v96
    %v344 = vunpack.c.h.bf16 %v96
    %v345 = vunpack.c.l.bf16 %v97
    %v346 = vunpack.c.h.bf16 %v97
    %v347 = vunpack.c.l.bf16 %v98
    %v348 = vunpack.c.h.bf16 %v98
    %v349 = vunpack.c.l.bf16 %v99
    %v350 = vunpack.c.h.bf16 %v99
    %v351 = vunpack.c.l.bf16 %v100
    %v352 = vunpack.c.h.bf16 %v100
    %v353 = vunpack.c.l.bf16 %v101
    %v354 = vunpack.c.h.bf16 %v101
    %v355 = vunpack.c.l.bf16 %v102
    %v356 = vunpack.c.h.bf16 %v102
    %v357 = vunpack.c.l.bf16 %v103
    %v358 = vunpack.c.h.bf16 %v103
    %v359 = vunpack.c.l.bf16 %v104
    %v360 = vunpack.c.h.bf16 %v104
    %v361 = vunpack.c.l.bf16 %v105
    %v362 = vunpack.c.h.bf16 %v105
    %v363 = vunpack.c.l.bf16 %v106
    %v364 = vunpack.c.h.bf16 %v106
    %v365 = vunpack.c.l.bf16 %v107
    %v366 = vunpack.c.h.bf16 %v107
    %v367 = vunpack.c.l.bf16 %v108
    %v368 = vunpack.c.h.bf16 %v108
    %v369 = vunpack.c.l.bf16 %v109
    %v370 = vunpack.c.h.bf16 %v109
    %v371 = vunpack.c.l.bf16 %v110
    %v372 = vunpack.c.h.bf16 %v110
    %v373 = vunpack.c.l.bf16 %v111
    %v374 = vunpack.c.h.bf16 %v111
    %v375 = vunpack.c.l.bf16 %v112
    %v376 = vunpack.c.h.bf16 %v112
    %v377 = vunpack.c.l.bf16 %v113
    %v378 = vunpack.c.h.bf16 %v113
    %v379 = vunpack.c.l.bf16 %v114
    %v380 = vunpack.c.h.bf16 %v114
    %v381 = vunpack.c.l.bf16 %v115
    %v382 = vunpack.c.h.bf16 %v115
    %v383 = vunpack.c.l.bf16 %v116
    %v384 = vunpack.c.h.bf16 %v116
    %v385 = vunpack.c.l.bf16 %v117
    %v386 = vunpack.c.h.bf16 %v117
    %v387 = vunpack.c.l.bf16 %v118
    %v388 = vunpack.c.h.bf16 %v118
    %v389 = vunpack.c.l.bf16 %v119
    %v390 = vunpack.c.h.bf16 %v119
    %v391 = vunpack.c.l.bf16 %v120
    %v392 = vunpack.c.h.bf16 %v120
    %v393 = vunpack.c.l.bf16 %v121
    %v394 = vunpack.c.h.bf16 %v121
    %v395 = vunpack.c.l.bf16 %v122
    %v396 = vunpack.c.h.bf16 %v122
    %v397 = vunpack.c.l.bf16 %v123
    %v398 = vunpack.c.h.bf16 %v123
    %v399 = vunpack.c.l.bf16 %v124
    %v400 = vunpack.c.h.bf16 %v124
    %v401 = vunpack.c.l.bf16 %v125
    %v402 = vunpack.c.h.bf16 %v125
    %v403 = vunpack.c.l.bf16 %v126
    %v404 = vunpack.c.h.bf16 %v126
    %v405 = vunpack.c.l.bf16 %v127
    %v406 = vunpack.c.h.bf16 %v127
    %v407 = vunpack.c.l.bf16 %v128
    %v408 = vunpack.c.h.bf16 %v128
    %v409 = vunpack.c.l.bf16 %v129
    %v410 = vunpack.c.h.bf16 %v129
    %v411 = vunpack.c.l.bf16 %v130
    %v412 = vunpack.c.h.bf16 %v130
    %v413 = vunpack.c.l.bf16 %v131
    %v414 = vunpack.c.h.bf16 %v131
    %v415 = vunpack.c.l.bf16 %v132
    %v416 = vunpack.c.h.bf16 %v132
    %v417 = vunpack.c.l.bf16 %v133
    %v418 = vunpack.c.h.bf16 %v133
    %v419 = vunpack.c.l.bf16 %v134
    %v420 = vunpack.c.h.bf16 %v134
    %v421 = vunpack.c.l.bf16 %v135
    %v422 = vunpack.c.h.bf16 %v135
    %v423 = vunpack.c.l.bf16 %v136
    %v424 = vunpack.c.h.bf16 %v136
    %v425 = vunpack.c.l.bf16 %v137
    %v426 = vunpack.c.h.bf16 %v137
    %v427 = vunpack.c.l.bf16 %v138
    %v428 = vunpack.c.h.bf16 %v138
    %v429 = vunpack.c.l.bf16 %v139
    %v430 = vunpack.c.h.bf16 %v139
    %v431 = vunpack.c.l.bf16 %v140
    %v432 = vunpack.c.h.bf16 %v140
    %v433 = vunpack.c.l.bf16 %v141
    %v434 = vunpack.c.h.bf16 %v141
    %v435 = vunpack.c.l.bf16 %v142
    %v436 = vunpack.c.h.bf16 %v142
    %v437 = vunpack.c.l.bf16 %v143
    %v438 = vunpack.c.h.bf16 %v143
    %v439 = vunpack.c.l.bf16 %v144
    %v440 = vunpack.c.h.bf16 %v144
    %v441 = vunpack.c.l.bf16 %v145
    %v442 = vunpack.c.h.bf16 %v145
    %v443 = vunpack.c.l.bf16 %v146
    %v444 = vunpack.c.h.bf16 %v146
    %v445 = vunpack.c.l.bf16 %v147
    %v446 = vunpack.c.h.bf16 %v147
    %v447 = vunpack.c.l.bf16 %v148
    %v448 = vunpack.c.h.bf16 %v148
    %v449 = vunpack.c.l.bf16 %v149
    %v450 = vunpack.c.h.bf16 %v149
    %v451 = vunpack.c.l.bf16 %v150
    %v452 = vunpack.c.h.bf16 %v150
    %v453 = vunpack.c.l.bf16 %v151
    %v454 = vunpack.c.h.bf16 %v151
    %v455 = vunpack.c.l.bf16 %v152
    %v456 = vunpack.c.h.bf16 %v152
    %v457 = vunpack.c.l.bf16 %v153
    %v458 = vunpack.c.h.bf16 %v153
    %v459 = vunpack.c.l.bf16 %v154
    %v460 = vunpack.c.h.bf16 %v154
    %v461 = vunpack.c.l.bf16 %v155
    %v462 = vunpack.c.h.bf16 %v155
    %v463 = vunpack.c.l.bf16 %v156
    %v464 = vunpack.c.h.bf16 %v156
    %v465 = vunpack.c.l.bf16 %v157
    %v466 = vunpack.c.h.bf16 %v157
    %v467 = vunpack.c.l.bf16 %v158
    %v468 = vunpack.c.h.bf16 %v158
    %v469 = vunpack.c.l.bf16 %v159
    %v470 = vunpack.c.h.bf16 %v159
    %v471 = vunpack.c.l.bf16 %v160
    %v472 = vunpack.c.h.bf16 %v160
    %v473 = vunpack.c.l.bf16 %v161
    %v474 = vunpack.c.h.bf16 %v161
    %v475 = vunpack.c.l.bf16 %v162
    %v476 = vunpack.c.h.bf16 %v162
    %v477 = vunpack.c.l.bf16 %v163
    %v478 = vunpack.c.h.bf16 %v163
    %v479 = vunpack.c.l.bf16 %v164
    %v480 = vunpack.c.h.bf16 %v164
    %v481 = vunpack.c.l.bf16 %v165
    %v482 = vunpack.c.h.bf16 %v165
    %v483 = vunpack.c.l.bf16 %v166
    %v484 = vunpack.c.h.bf16 %v166
    %v485 = vunpack.c.l.bf16 %v167
    %v486 = vunpack.c.h.bf16 %v167
    %v487 = vunpack.c.l.bf16 %v168
    %v488 = vunpack.c.h.bf16 %v168
    %v489 = vunpack.c.l.bf16 %v169
    %v490 = vunpack.c.h.bf16 %v169
    %v491 = vunpack.c.l.bf16 %v170
    %v492 = vunpack.c.h.bf16 %v170
    %v493 = vunpack.c.l.bf16 %v171
    %v494 = vunpack.c.h.bf16 %v171
    %v495 = vunpack.c.l.bf16 %v172
    %v496 = vunpack.c.h.bf16 %v172
    %v497 = vunpack.c.l.bf16 %v173
    %v498 = vunpack.c.h.bf16 %v173
    %v499 = vunpack.c.l.bf16 %v174
    %v500 = vunpack.c.h.bf16 %v174
    %v501 = vunpack.c.l.bf16 %v175
    %v502 = vunpack.c.h.bf16 %v175
    %v503 = vunpack.c.l.bf16 %v176
    %v504 = vunpack.c.h.bf16 %v176
    %v505 = vunpack.c.l.bf16 %v177
    %v506 = vunpack.c.h.bf16 %v177
    %v507 = vunpack.c.l.bf16 %v178
    %v508 = vunpack.c.h.bf16 %v178
    %v509 = vunpack.c.l.bf16 %v179
    %v510 = vunpack.c.h.bf16 %v179
    %v511 = vunpack.c.l.bf16 %v180
    %v512 = vunpack.c.h.bf16 %v180
    %v513 = vunpack.c.l.bf16 %v181
    %v514 = vunpack.c.h.bf16 %v181
    %v515 = vunpack.c.l.bf16 %v182
    %v516 = vunpack.c.h.bf16 %v182
    %v517 = vunpack.c.l.bf16 %v183
    %v518 = vunpack.c.h.bf16 %v183
    %v519 = vunpack.c.l.bf16 %v184
    %v520 = vunpack.c.h.bf16 %v184
    %v521 = vunpack.c.l.bf16 %v185
    %v522 = vunpack.c.h.bf16 %v185
    %v523 = vunpack.c.l.bf16 %v186
    %v524 = vunpack.c.h.bf16 %v186
    %v525 = vunpack.c.l.bf16 %v187
    %v526 = vunpack.c.h.bf16 %v187
    %v527 = vunpack.c.l.bf16 %v188
    %v528 = vunpack.c.h.bf16 %v188
    %v529 = vunpack.c.l.bf16 %v189
    %v530 = vunpack.c.h.bf16 %v189
    %v531 = vunpack.c.l.bf16 %v190
    %v532 = vunpack.c.h.bf16 %v190
    %v533 = vunpack.c.l.bf16 %v191
    %v534 = vunpack.c.h.bf16 %v191
    %v535 = vunpack.c.l.bf16 %v192
    %v536 = vunpack.c.h.bf16 %v192
    %v537 = vunpack.c.l.bf16 %v193
    %v538 = vunpack.c.h.bf16 %v193
    %v539 = vunpack.c.l.bf16 %v194
    %v540 = vunpack.c.h.bf16 %v194
    %v541 = vunpack.c.l.bf16 %v195
    %v542 = vunpack.c.h.bf16 %v195
    %v543 = vunpack.c.l.bf16 %v196
    %v544 = vunpack.c.h.bf16 %v196
    %v545 = vunpack.c.l.bf16 %v197
    %v546 = vunpack.c.h.bf16 %v197
    %v547 = vunpack.c.l.bf16 %v198
    %v548 = vunpack.c.h.bf16 %v198
    %v549 = vunpack.c.l.bf16 %v199
    %v550 = vunpack.c.h.bf16 %v199
    %v551 = vunpack.c.l.bf16 %v200
    %v552 = vunpack.c.h.bf16 %v200
    %v553 = vunpack.c.l.bf16 %v201
    %v554 = vunpack.c.h.bf16 %v201
    %v555 = vunpack.c.l.bf16 %v202
    %v556 = vunpack.c.h.bf16 %v202
    %v557 = vunpack.c.l.bf16 %v203
    %v558 = vunpack.c.h.bf16 %v203
    %v559 = vunpack.c.l.bf16 %v204
    %v560 = vunpack.c.h.bf16 %v204
    %v561 = vunpack.c.l.bf16 %v205
    %v562 = vunpack.c.h.bf16 %v205
    %v563 = vunpack.c.l.bf16 %v206
    %v564 = vunpack.c.h.bf16 %v206
    %v565 = vunpack.c.l.bf16 %v207
    %v566 = vunpack.c.h.bf16 %v207
    %v567 = vunpack.c.l.bf16 %v208
    %v568 = vunpack.c.h.bf16 %v208
    %v569 = vunpack.c.l.bf16 %v209
    %v570 = vunpack.c.h.bf16 %v209
    %v571 = vunpack.c.l.bf16 %v210
    %v572 = vunpack.c.h.bf16 %v210
    %v573 = vunpack.c.l.bf16 %v211
    %v574 = vunpack.c.h.bf16 %v211
    %v575 = vunpack.c.l.bf16 %v212
    %v576 = vunpack.c.h.bf16 %v212
    %v577 = vunpack.c.l.bf16 %v213
    %v578 = vunpack.c.h.bf16 %v213
    %v579 = vunpack.c.l.bf16 %v214
    %v580 = vunpack.c.h.bf16 %v214
    %v581 = vunpack.c.l.bf16 %v215
    %v582 = vunpack.c.h.bf16 %v215
    %v583 = vunpack.c.l.bf16 %v216
    %v584 = vunpack.c.h.bf16 %v216
    %v585 = vunpack.c.l.bf16 %v217
    %v586 = vunpack.c.h.bf16 %v217
    %v587 = vunpack.c.l.bf16 %v218
    %v588 = vunpack.c.h.bf16 %v218
    %v589 = vunpack.c.l.bf16 %v219
    %v590 = vunpack.c.h.bf16 %v219
    %v591 = vunpack.c.l.bf16 %v220
    %v592 = vunpack.c.h.bf16 %v220
    %v593 = vunpack.c.l.bf16 %v221
    %v594 = vunpack.c.h.bf16 %v221
    %v595 = vunpack.c.l.bf16 %v222
    %v596 = vunpack.c.h.bf16 %v222
    %v597 = vunpack.c.l.bf16 %v223
    %v598 = vunpack.c.h.bf16 %v223
    %v599 = vunpack.c.l.bf16 %v224
    %v600 = vunpack.c.h.bf16 %v224
    %v601 = vunpack.c.l.bf16 %v225
    %v602 = vunpack.c.h.bf16 %v225
    %v603 = vunpack.c.l.bf16 %v226
    %v604 = vunpack.c.h.bf16 %v226
    %v605 = vunpack.c.l.bf16 %v227
    %v606 = vunpack.c.h.bf16 %v227
    %v607 = vunpack.c.l.bf16 %v228
    %v608 = vunpack.c.h.bf16 %v228
    %v609 = vunpack.c.l.bf16 %v229
    %v610 = vunpack.c.h.bf16 %v229
    %v611 = vunpack.c.l.bf16 %v230
    %v612 = vunpack.c.h.bf16 %v230
    %v613 = vunpack.c.l.bf16 %v231
    %v614 = vunpack.c.h.bf16 %v231
    %v615 = vunpack.c.l.bf16 %v232
    %v616 = vunpack.c.h.bf16 %v232
    %v617 = vunpack.c.l.bf16 %v233
    %v618 = vunpack.c.h.bf16 %v233
    %v619 = vunpack.c.l.bf16 %v234
    %v620 = vunpack.c.h.bf16 %v234
    %v621 = vunpack.c.l.bf16 %v235
    %v622 = vunpack.c.h.bf16 %v235
    %v623 = vunpack.c.l.bf16 %v236
    %v624 = vunpack.c.h.bf16 %v236
    %v625 = vunpack.c.l.bf16 %v237
    %v626 = vunpack.c.h.bf16 %v237
    %v627 = vunpack.c.l.bf16 %v238
    %v628 = vunpack.c.h.bf16 %v238
    %629 = vmatprep.subr.mxu0 %v246
    %630 = vmatpush1.xpose.msra.mxu0 %v245
    %631 = vmatprep.subr.mxu0 %v252
    %632 = vmatpush1.xpose.msra.mxu0 %v251
    %633 = vmatprep.subr.mxu0 %v258
    %634 = vmatpush1.xpose.msra.mxu0 %v257
    %635 = vmatprep.subr.mxu0 %v264
    %636 = vmatpush1.xpose.msra.mxu0 %v263
    %637 = vmatprep.subr.mxu0 %v270
    %638 = vmatpush1.xpose.msra.mxu0 %v269
    %639 = vmatprep.subr.mxu0 %v276
    %640 = vmatpush1.xpose.msra.mxu0 %v275
    %641 = vmatprep.subr.mxu0 %v282
    %642 = vmatpush1.xpose.msra.mxu0 %v281
    %643 = vmatprep.subr.mxu0 %v288
    %644 = vmatpush1.xpose.msra.mxu0 %v287
    %645 = vmatprep.subr.mxu0 %v294
    %646 = vmatpush1.xpose.msra.mxu0 %v293
    %647 = vmatprep.subr.mxu0 %v300
    %648 = vmatpush1.xpose.msra.mxu0 %v299
    %649 = vmatprep.subr.mxu0 %v306
    %650 = vmatpush1.xpose.msra.mxu0 %v305
    %651 = vmatprep.subr.mxu0 %v312
    %652 = vmatpush1.xpose.msra.mxu0 %v311
    %653 = vmatprep.subr.mxu0 %v318
    %654 = vmatpush1.xpose.msra.mxu0 %v317
    %655 = vmatprep.subr.mxu0 %v324
    %656 = vmatpush1.xpose.msra.mxu0 %v323
    %657 = vmatprep.subr.mxu0 %v330
    %658 = vmatpush1.xpose.msra.mxu0 %v329
    %659 = vmatprep.subr.mxu0 %v336
    %660 = vmatpush1.xpose.msra.mxu0 %v335
    %661 = vmatprep.subr.mxu0 %v342
    %662 = vmatpush1.xpose.msra.mxu0 %v341
    %663 = vmatprep.subr.mxu0 %v348
    %664 = vmatpush1.xpose.msra.mxu0 %v347
    %665 = vmatprep.subr.mxu0 %v354
    %666 = vmatpush1.xpose.msra.mxu0 %v353
    %667 = vmatprep.subr.mxu0 %v360
    %668 = vmatpush1.xpose.msra.mxu0 %v359
    %669 = vmatprep.subr.mxu0 %v366
    %670 = vmatpush1.xpose.msra.mxu0 %v365
    %671 = vmatprep.subr.mxu0 %v372
    %672 = vmatpush1.xpose.msra.mxu0 %v371
    %673 = vmatprep.subr.mxu0 %v378
    %674 = vmatpush1.xpose.msra.mxu0 %v377
    %675 = vmatprep.subr.mxu0 %v384
    %676 = vmatpush1.xpose.msra.mxu0 %v383
    %677 = vmatprep.subr.mxu0 %v390
    %678 = vmatpush1.xpose.msra.mxu0 %v389
    %679 = vmatprep.subr.mxu0 %v396
    %680 = vmatpush1.xpose.msra.mxu0 %v395
    %681 = vmatprep.subr.mxu0 %v402
    %682 = vmatpush1.xpose.msra.mxu0 %v401
    %683 = vmatprep.subr.mxu0 %v408
    %684 = vmatpush1.xpose.msra.mxu0 %v407
    %685 = vmatprep.subr.mxu0 %v414
    %686 = vmatpush1.xpose.msra.mxu0 %v413
    %687 = vmatprep.subr.mxu0 %v420
    %688 = vmatpush1.xpose.msra.mxu0 %v419
    %689 = vmatprep.subr.mxu0 %v426
    %690 = vmatpush1.xpose.msra.mxu0 %v425
    %691 = vmatprep.subr.mxu0 %v432
    %692 = vmatpush1.xpose.msra.mxu0 %v431
    %693 = vmatprep.mubr.f32.mxu0 %v240
    %694 = vmatmul.mubr.f32.gmra.mrb[0].mxu0 %v239
    %v695 = vpop.f32.mrb[0].mxu0
    %v696 = vadd.f32 0.0, %v695
    %v697 = vpop.f32.mrb[0].mxu0
    %v698 = vadd.f32 0.0, %v697
    %699 = vdwg.mxu0
    %700 = vmatprep.subr.mxu0 %v248
    %701 = vmatpush1.xpose.msra.mxu0 %v247
    %702 = vmatprep.subr.mxu0 %v254
    %703 = vmatpush1.xpose.msra.mxu0 %v253
    %704 = vmatprep.subr.mxu0 %v260
    %705 = vmatpush1.xpose.msra.mxu0 %v259
    %706 = vmatprep.subr.mxu0 %v266
    %707 = vmatpush1.xpose.msra.mxu0 %v265
    %708 = vmatprep.subr.mxu0 %v272
    %709 = vmatpush1.xpose.msra.mxu0 %v271
    %710 = vmatprep.subr.mxu0 %v278
    %711 = vmatpush1.xpose.msra.mxu0 %v277
    %712 = vmatprep.subr.mxu0 %v284
    %713 = vmatpush1.xpose.msra.mxu0 %v283
    %714 = vmatprep.subr.mxu0 %v290
    %715 = vmatpush1.xpose.msra.mxu0 %v289
    %716 = vmatprep.subr.mxu0 %v296
    %717 = vmatpush1.xpose.msra.mxu0 %v295
    %718 = vmatprep.subr.mxu0 %v302
    %719 = vmatpush1.xpose.msra.mxu0 %v301
    %720 = vmatprep.subr.mxu0 %v308
    %721 = vmatpush1.xpose.msra.mxu0 %v307
    %722 = vmatprep.subr.mxu0 %v314
    %723 = vmatpush1.xpose.msra.mxu0 %v313
    %724 = vmatprep.subr.mxu0 %v320
    %725 = vmatpush1.xpose.msra.mxu0 %v319
    %726 = vmatprep.subr.mxu0 %v326
    %727 = vmatpush1.xpose.msra.mxu0 %v325
    %728 = vmatprep.subr.mxu0 %v332
    %729 = vmatpush1.xpose.msra.mxu0 %v331
    %730 = vmatprep.subr.mxu0 %v338
    %731 = vmatpush1.xpose.msra.mxu0 %v337
    %732 = vmatprep.subr.mxu0 %v344
    %733 = vmatpush1.xpose.msra.mxu0 %v343
    %734 = vmatprep.subr.mxu0 %v350
    %735 = vmatpush1.xpose.msra.mxu0 %v349
    %736 = vmatprep.subr.mxu0 %v356
    %737 = vmatpush1.xpose.msra.mxu0 %v355
    %738 = vmatprep.subr.mxu0 %v362
    %739 = vmatpush1.xpose.msra.mxu0 %v361
    %740 = vmatprep.subr.mxu0 %v368
    %741 = vmatpush1.xpose.msra.mxu0 %v367
    %742 = vmatprep.subr.mxu0 %v374
    %743 = vmatpush1.xpose.msra.mxu0 %v373
    %744 = vmatprep.subr.mxu0 %v380
    %745 = vmatpush1.xpose.msra.mxu0 %v379
    %746 = vmatprep.subr.mxu0 %v386
    %747 = vmatpush1.xpose.msra.mxu0 %v385
    %748 = vmatprep.subr.mxu0 %v392
    %749 = vmatpush1.xpose.msra.mxu0 %v391
    %750 = vmatprep.subr.mxu0 %v398
    %751 = vmatpush1.xpose.msra.mxu0 %v397
    %752 = vmatprep.subr.mxu0 %v404
    %753 = vmatpush1.xpose.msra.mxu0 %v403
    %754 = vmatprep.subr.mxu0 %v410
    %755 = vmatpush1.xpose.msra.mxu0 %v409
    %756 = vmatprep.subr.mxu0 %v416
    %757 = vmatpush1.xpose.msra.mxu0 %v415
    %758 = vmatprep.subr.mxu0 %v422
    %759 = vmatpush1.xpose.msra.mxu0 %v421
    %760 = vmatprep.subr.mxu0 %v428
    %761 = vmatpush1.xpose.msra.mxu0 %v427
    %762 = vmatprep.subr.mxu0 %v434
    %763 = vmatpush1.xpose.msra.mxu0 %v433
    %764 = vmatprep.mubr.f32.mxu0 %v242
    %765 = vmatmul.mubr.f32.gmra.mrb[0].mxu0 %v241
    %v766 = vpop.f32.mrb[0].mxu0
    %v767 = vadd.f32 %v696, %v766
    %v768 = vpop.f32.mrb[0].mxu0
    %v769 = vadd.f32 %v698, %v768
    %770 = vdwg.mxu0
    %771 = vmatprep.subr.mxu0 %v250
    %772 = vmatpush1.xpose.msra.mxu0 %v249
    %773 = vmatprep.subr.mxu0 %v256
    %774 = vmatpush1.xpose.msra.mxu0 %v255
    %775 = vmatprep.subr.mxu0 %v262
    %776 = vmatpush1.xpose.msra.mxu0 %v261
    %777 = vmatprep.subr.mxu0 %v268
    %778 = vmatpush1.xpose.msra.mxu0 %v267
    %779 = vmatprep.subr.mxu0 %v274
    %780 = vmatpush1.xpose.msra.mxu0 %v273
    %781 = vmatprep.subr.mxu0 %v280
    %782 = vmatpush1.xpose.msra.mxu0 %v279
    %783 = vmatprep.subr.mxu0 %v286
    %784 = vmatpush1.xpose.msra.mxu0 %v285
    %785 = vmatprep.subr.mxu0 %v292
    %786 = vmatpush1.xpose.msra.mxu0 %v291
    %787 = vmatprep.subr.mxu0 %v298
    %788 = vmatpush1.xpose.msra.mxu0 %v297
    %789 = vmatprep.subr.mxu0 %v304
    %790 = vmatpush1.xpose.msra.mxu0 %v303
    %791 = vmatprep.subr.mxu0 %v310
    %792 = vmatpush1.xpose.msra.mxu0 %v309
    %793 = vmatprep.subr.mxu0 %v316
    %794 = vmatpush1.xpose.msra.mxu0 %v315
    %795 = vmatprep.subr.mxu0 %v322
    %796 = vmatpush1.xpose.msra.mxu0 %v321
    %797 = vmatprep.subr.mxu0 %v328
    %798 = vmatpush1.xpose.msra.mxu0 %v327
    %799 = vmatprep.subr.mxu0 %v334
    %800 = vmatpush1.xpose.msra.mxu0 %v333
    %801 = vmatprep.subr.mxu0 %v340
    %802 = vmatpush1.xpose.msra.mxu0 %v339
    %803 = vmatprep.subr.mxu0 %v346
    %804 = vmatpush1.xpose.msra.mxu0 %v345
    %805 = vmatprep.subr.mxu0 %v352
    %806 = vmatpush1.xpose.msra.mxu0 %v351
    %807 = vmatprep.subr.mxu0 %v358
    %808 = vmatpush1.xpose.msra.mxu0 %v357
    %809 = vmatprep.subr.mxu0 %v364
    %810 = vmatpush1.xpose.msra.mxu0 %v363
    %811 = vmatprep.subr.mxu0 %v370
    %812 = vmatpush1.xpose.msra.mxu0 %v369
    %813 = vmatprep.subr.mxu0 %v376
    %814 = vmatpush1.xpose.msra.mxu0 %v375
    %815 = vmatprep.subr.mxu0 %v382
    %816 = vmatpush1.xpose.msra.mxu0 %v381
    %817 = vmatprep.subr.mxu0 %v388
    %818 = vmatpush1.xpose.msra.mxu0 %v387
    %819 = vmatprep.subr.mxu0 %v394
    %820 = vmatpush1.xpose.msra.mxu0 %v393
    %821 = vmatprep.subr.mxu0 %v400
    %822 = vmatpush1.xpose.msra.mxu0 %v399
    %823 = vmatprep.subr.mxu0 %v406
    %824 = vmatpush1.xpose.msra.mxu0 %v405
    %825 = vmatprep.subr.mxu0 %v412
    %826 = vmatpush1.xpose.msra.mxu0 %v411
    %827 = vmatprep.subr.mxu0 %v418
    %828 = vmatpush1.xpose.msra.mxu0 %v417
    %829 = vmatprep.subr.mxu0 %v424
    %830 = vmatpush1.xpose.msra.mxu0 %v423
    %831 = vmatprep.subr.mxu0 %v430
    %832 = vmatpush1.xpose.msra.mxu0 %v429
    %833 = vmatprep.subr.mxu0 %v436
    %834 = vmatpush1.xpose.msra.mxu0 %v435
    %835 = vmatprep.mubr.f32.mxu0 %v244
    %836 = vmatmul.mubr.f32.gmra.mrb[0].mxu0 %v243
    %v837 = vpop.f32.mrb[0].mxu0
    %v838 = vadd.f32 %v767, %v837
    %v839 = vpop.f32.mrb[0].mxu0
    %v840 = vadd.f32 %v769, %v839
    %841 = vdwg.mxu0
    %842 = vmatprep.subr.mxu0 %v438
    %843 = vmatpush1.xpose.msra.mxu0 %v437
    %844 = vmatprep.subr.mxu0 %v444
    %845 = vmatpush1.xpose.msra.mxu0 %v443
    %846 = vmatprep.subr.mxu0 %v450
    %847 = vmatpush1.xpose.msra.mxu0 %v449
    %848 = vmatprep.subr.mxu0 %v456
    %849 = vmatpush1.xpose.msra.mxu0 %v455
    %850 = vmatprep.subr.mxu0 %v462
    %851 = vmatpush1.xpose.msra.mxu0 %v461
    %852 = vmatprep.subr.mxu0 %v468
    %853 = vmatpush1.xpose.msra.mxu0 %v467
    %854 = vmatprep.subr.mxu0 %v474
    %855 = vmatpush1.xpose.msra.mxu0 %v473
    %856 = vmatprep.subr.mxu0 %v480
    %857 = vmatpush1.xpose.msra.mxu0 %v479
    %858 = vmatprep.subr.mxu0 %v486
    %859 = vmatpush1.xpose.msra.mxu0 %v485
    %860 = vmatprep.subr.mxu0 %v492
    %861 = vmatpush1.xpose.msra.mxu0 %v491
    %862 = vmatprep.subr.mxu0 %v498
    %863 = vmatpush1.xpose.msra.mxu0 %v497
    %864 = vmatprep.subr.mxu0 %v504
    %865 = vmatpush1.xpose.msra.mxu0 %v503
    %866 = vmatprep.subr.mxu0 %v510
    %867 = vmatpush1.xpose.msra.mxu0 %v509
    %868 = vmatprep.subr.mxu0 %v516
    %869 = vmatpush1.xpose.msra.mxu0 %v515
    %870 = vmatprep.subr.mxu0 %v522
    %871 = vmatpush1.xpose.msra.mxu0 %v521
    %872 = vmatprep.subr.mxu0 %v528
    %873 = vmatpush1.xpose.msra.mxu0 %v527
    %874 = vmatprep.subr.mxu0 %v534
    %875 = vmatpush1.xpose.msra.mxu0 %v533
    %876 = vmatprep.subr.mxu0 %v540
    %877 = vmatpush1.xpose.msra.mxu0 %v539
    %878 = vmatprep.subr.mxu0 %v546
    %879 = vmatpush1.xpose.msra.mxu0 %v545
    %880 = vmatprep.subr.mxu0 %v552
    %881 = vmatpush1.xpose.msra.mxu0 %v551
    %882 = vmatprep.subr.mxu0 %v558
    %883 = vmatpush1.xpose.msra.mxu0 %v557
    %884 = vmatprep.subr.mxu0 %v564
    %885 = vmatpush1.xpose.msra.mxu0 %v563
    %886 = vmatprep.subr.mxu0 %v570
    %887 = vmatpush1.xpose.msra.mxu0 %v569
    %888 = vmatprep.subr.mxu0 %v576
    %889 = vmatpush1.xpose.msra.mxu0 %v575
    %890 = vmatprep.subr.mxu0 %v582
    %891 = vmatpush1.xpose.msra.mxu0 %v581
    %892 = vmatprep.subr.mxu0 %v588
    %893 = vmatpush1.xpose.msra.mxu0 %v587
    %894 = vmatprep.subr.mxu0 %v594
    %895 = vmatpush1.xpose.msra.mxu0 %v593
    %896 = vmatprep.subr.mxu0 %v600
    %897 = vmatpush1.xpose.msra.mxu0 %v599
    %898 = vmatprep.subr.mxu0 %v606
    %899 = vmatpush1.xpose.msra.mxu0 %v605
    %900 = vmatprep.subr.mxu0 %v612
    %901 = vmatpush1.xpose.msra.mxu0 %v611
    %902 = vmatprep.subr.mxu0 %v618
    %903 = vmatpush1.xpose.msra.mxu0 %v617
    %904 = vmatprep.subr.mxu0 %v624
    %905 = vmatpush1.xpose.msra.mxu0 %v623
    %906 = vmatprep.mubr.f32.mxu0 %v240
    %907 = vmatmul.mubr.f32.gmra.mrb[0].mxu0 %v239
    %v908 = vpop.f32.mrb[0].mxu0
    %v909 = vadd.f32 0.0, %v908
    %v910 = vpop.f32.mrb[0].mxu0
    %v911 = vadd.f32 0.0, %v910
    %912 = vdwg.mxu0
    %913 = vmatprep.subr.mxu0 %v440
    %914 = vmatpush1.xpose.msra.mxu0 %v439
    %915 = vmatprep.subr.mxu0 %v446
    %916 = vmatpush1.xpose.msra.mxu0 %v445
    %917 = vmatprep.subr.mxu0 %v452
    %918 = vmatpush1.xpose.msra.mxu0 %v451
    %919 = vmatprep.subr.mxu0 %v458
    %920 = vmatpush1.xpose.msra.mxu0 %v457
    %921 = vmatprep.subr.mxu0 %v464
    %922 = vmatpush1.xpose.msra.mxu0 %v463
    %923 = vmatprep.subr.mxu0 %v470
    %924 = vmatpush1.xpose.msra.mxu0 %v469
    %925 = vmatprep.subr.mxu0 %v476
    %926 = vmatpush1.xpose.msra.mxu0 %v475
    %927 = vmatprep.subr.mxu0 %v482
    %928 = vmatpush1.xpose.msra.mxu0 %v481
    %929 = vmatprep.subr.mxu0 %v488
    %930 = vmatpush1.xpose.msra.mxu0 %v487
    %931 = vmatprep.subr.mxu0 %v494
    %932 = vmatpush1.xpose.msra.mxu0 %v493
    %933 = vmatprep.subr.mxu0 %v500
    %934 = vmatpush1.xpose.msra.mxu0 %v499
    %935 = vmatprep.subr.mxu0 %v506
    %936 = vmatpush1.xpose.msra.mxu0 %v505
    %937 = vmatprep.subr.mxu0 %v512
    %938 = vmatpush1.xpose.msra.mxu0 %v511
    %939 = vmatprep.subr.mxu0 %v518
    %940 = vmatpush1.xpose.msra.mxu0 %v517
    %941 = vmatprep.subr.mxu0 %v524
    %942 = vmatpush1.xpose.msra.mxu0 %v523
    %943 = vmatprep.subr.mxu0 %v530
    %944 = vmatpush1.xpose.msra.mxu0 %v529
    %945 = vmatprep.subr.mxu0 %v536
    %946 = vmatpush1.xpose.msra.mxu0 %v535
    %947 = vmatprep.subr.mxu0 %v542
    %948 = vmatpush1.xpose.msra.mxu0 %v541
    %949 = vmatprep.subr.mxu0 %v548
    %950 = vmatpush1.xpose.msra.mxu0 %v547
    %951 = vmatprep.subr.mxu0 %v554
    %952 = vmatpush1.xpose.msra.mxu0 %v553
    %953 = vmatprep.subr.mxu0 %v560
    %954 = vmatpush1.xpose.msra.mxu0 %v559
    %955 = vmatprep.subr.mxu0 %v566
    %956 = vmatpush1.xpose.msra.mxu0 %v565
    %957 = vmatprep.subr.mxu0 %v572
    %958 = vmatpush1.xpose.msra.mxu0 %v571
    %959 = vmatprep.subr.mxu0 %v578
    %960 = vmatpush1.xpose.msra.mxu0 %v577
    %961 = vmatprep.subr.mxu0 %v584
    %962 = vmatpush1.xpose.msra.mxu0 %v583
    %963 = vmatprep.subr.mxu0 %v590
    %964 = vmatpush1.xpose.msra.mxu0 %v589
    %965 = vmatprep.subr.mxu0 %v596
    %966 = vmatpush1.xpose.msra.mxu0 %v595
    %967 = vmatprep.subr.mxu0 %v602
    %968 = vmatpush1.xpose.msra.mxu0 %v601
    %969 = vmatprep.subr.mxu0 %v608
    %970 = vmatpush1.xpose.msra.mxu0 %v607
    %971 = vmatprep.subr.mxu0 %v614
    %972 = vmatpush1.xpose.msra.mxu0 %v613
    %973 = vmatprep.subr.mxu0 %v620
    %974 = vmatpush1.xpose.msra.mxu0 %v619
    %975 = vmatprep.subr.mxu0 %v626
    %976 = vmatpush1.xpose.msra.mxu0 %v625
    %977 = vmatprep.mubr.f32.mxu0 %v242
    %978 = vmatmul.mubr.f32.gmra.mrb[0].mxu0 %v241
    %v979 = vpop.f32.mrb[0].mxu0
    %v980 = vadd.f32 %v909, %v979
    %v981 = vpop.f32.mrb[0].mxu0
    %v982 = vadd.f32 %v911, %v981
    %983 = vdwg.mxu0
    %984 = vmatprep.subr.mxu0 %v442
    %985 = vmatpush1.xpose.msra.mxu0 %v441
    %986 = vmatprep.subr.mxu0 %v448
    %987 = vmatpush1.xpose.msra.mxu0 %v447
    %988 = vmatprep.subr.mxu0 %v454
    %989 = vmatpush1.xpose.msra.mxu0 %v453
    %990 = vmatprep.subr.mxu0 %v460
    %991 = vmatpush1.xpose.msra.mxu0 %v459
    %992 = vmatprep.subr.mxu0 %v466
    %993 = vmatpush1.xpose.msra.mxu0 %v465
    %994 = vmatprep.subr.mxu0 %v472
    %995 = vmatpush1.xpose.msra.mxu0 %v471
    %996 = vmatprep.subr.mxu0 %v478
    %997 = vmatpush1.xpose.msra.mxu0 %v477
    %998 = vmatprep.subr.mxu0 %v484
    %999 = vmatpush1.xpose.msra.mxu0 %v483
    %1000 = vmatprep.subr.mxu0 %v490
    %1001 = vmatpush1.xpose.msra.mxu0 %v489
    %1002 = vmatprep.subr.mxu0 %v496
    %1003 = vmatpush1.xpose.msra.mxu0 %v495
    %1004 = vmatprep.subr.mxu0 %v502
    %1005 = vmatpush1.xpose.msra.mxu0 %v501
    %1006 = vmatprep.subr.mxu0 %v508
    %1007 = vmatpush1.xpose.msra.mxu0 %v507
    %1008 = vmatprep.subr.mxu0 %v514
    %1009 = vmatpush1.xpose.msra.mxu0 %v513
    %1010 = vmatprep.subr.mxu0 %v520
    %1011 = vmatpush1.xpose.msra.mxu0 %v519
    %1012 = vmatprep.subr.mxu0 %v526
    %1013 = vmatpush1.xpose.msra.mxu0 %v525
    %1014 = vmatprep.subr.mxu0 %v532
    %1015 = vmatpush1.xpose.msra.mxu0 %v531
    %1016 = vmatprep.subr.mxu0 %v538
    %1017 = vmatpush1.xpose.msra.mxu0 %v537
    %1018 = vmatprep.subr.mxu0 %v544
    %1019 = vmatpush1.xpose.msra.mxu0 %v543
    %1020 = vmatprep.subr.mxu0 %v550
    %1021 = vmatpush1.xpose.msra.mxu0 %v549
    %1022 = vmatprep.subr.mxu0 %v556
    %1023 = vmatpush1.xpose.msra.mxu0 %v555
    %1024 = vmatprep.subr.mxu0 %v562
    %1025 = vmatpush1.xpose.msra.mxu0 %v561
    %1026 = vmatprep.subr.mxu0 %v568
    %1027 = vmatpush1.xpose.msra.mxu0 %v567
    %1028 = vmatprep.subr.mxu0 %v574
    %1029 = vmatpush1.xpose.msra.mxu0 %v573
    %1030 = vmatprep.subr.mxu0 %v580
    %1031 = vmatpush1.xpose.msra.mxu0 %v579
    %1032 = vmatprep.subr.mxu0 %v586
    %1033 = vmatpush1.xpose.msra.mxu0 %v585
    %1034 = vmatprep.subr.mxu0 %v592
    %1035 = vmatpush1.xpose.msra.mxu0 %v591
    %1036 = vmatprep.subr.mxu0 %v598
    %1037 = vmatpush1.xpose.msra.mxu0 %v597
    %1038 = vmatprep.subr.mxu0 %v604
    %1039 = vmatpush1.xpose.msra.mxu0 %v603
    %1040 = vmatprep.subr.mxu0 %v610
    %1041 = vmatpush1.xpose.msra.mxu0 %v609
    %1042 = vmatprep.subr.mxu0 %v616
    %1043 = vmatpush1.xpose.msra.mxu0 %v615
    %1044 = vmatprep.subr.mxu0 %v622
    %1045 = vmatpush1.xpose.msra.mxu0 %v621
    %1046 = vmatprep.subr.mxu0 %v628
    %1047 = vmatpush1.xpose.msra.mxu0 %v627
    %1048 = vmatprep.mubr.f32.mxu0 %v244
    %1049 = vmatmul.mubr.f32.gmra.mrb[0].mxu0 %v243
    %v1050 = vpop.f32.mrb[0].mxu0
    %v1051 = vadd.f32 %v980, %v1050
    %v1052 = vpop.f32.mrb[0].mxu0
    %v1053 = vadd.f32 %v982, %v1052
    %1054 = vdwg.mxu0
    %v1055 = vld [vmem:[%s2] sm:$0x3]
    %1057 = vset.pattern.permute.xlu0 0
    %1058 = vperm.xlu0 %1057, %v1055
    %v1059 = vpop.permute.xlu0 %1058
    %v1061 = vadd.f32 %v838, %v1059
    %v1062 = vadd.f32 %v840, %v1059
    %v1063 = vadd.f32 %v1051, %v1059
    %v1064 = vadd.f32 %v1053, %v1059
    %v1065 = vld [vmem:[%s3] sm:$0xff]
    %vm1066 = vcmp.ge.f32.partialorder %v1065, 0.0
    %v1067 = vsel %vm1066, 1, 0
    %v1068 = vcvt.s32.f32 %v1067
    %v1069 = vand.u32 2147483647, %v1061
    %v1070 = vand.u32 2147483647, %v1062
    %v1071 = vand.u32 2147483647, %v1063
    %v1072 = vand.u32 2147483647, %v1064
    %v1073 = vsub.f32 0.0, %v1069
    %v1074 = vsub.f32 0.0, %v1070
    %v1075 = vsub.f32 0.0, %v1071
    %v1076 = vsub.f32 0.0, %v1072
    %v1077 = vmul.f32 %v1073, 1.442695
    %v1078 = vpow.pop %v1077
    %v1079 = vmul.f32 %v1074, 1.442695
    %v1080 = vpow.pop %v1079
    %v1081 = vmul.f32 %v1075, 1.442695
    %v1082 = vpow.pop %v1081
    %v1083 = vmul.f32 %v1076, 1.442695
    %v1084 = vpow.pop %v1083
    %v1085 = vmax.f32 %v1061, 0.0
    %v1086 = vmax.f32 %v1062, 0.0
    %v1087 = vmax.f32 %v1063, 0.0
    %v1088 = vmax.f32 %v1064, 0.0
    %v1090 = vcombine.high %v1065, %v1065
    %v1092 = vunpack.c.l.s4 1983009808
    %v1093 = vunpack.c.0.s8 %v1092
    %v1094 = vlaneseq
    %v1095 = vshrl.u32 %v1094, 7
    %v1096 = vsub.s32 %v1093, %v1095
    %v1097 = vrot.slane %v1065, %v1096
    %v1099 = vunpack.c.l.s4 1983009808
    %v1100 = vunpack.c.0.s8 %v1099
    %v1101 = vlaneseq
    %v1102 = vshrl.u32 %v1101, 7
    %v1103 = vsub.s32 %v1100, %v1102
    %v1104 = vrot.slane %v1090, %v1103
    %v1105 = vcombine.high %v1097, %v1097
    %v1106 = vcombine.high %v1104, %v1104
    %v1111 = vmul.f32 %v1061, %v1097
    %v1112 = vmul.f32 %v1062, %v1105
    %v1113 = vmul.f32 %v1063, %v1104
    %v1114 = vmul.f32 %v1064, %v1106
    %v1115 = vsub.f32 %v1085, %v1111
    %v1116 = vsub.f32 %v1086, %v1112
    %v1117 = vsub.f32 %v1087, %v1113
    %v1118 = vsub.f32 %v1088, %v1114
    %v1119 = vadd.f32 %v1078, 1.0
    %v1120 = vlog2.pop %v1119
    %v1121 = vmul.f32 %v1120, 0.6931472
    %v1122 = vmul.f32 -0.5, %v1078
    %v1123 = vadd.f32 %v1122, 1.0
    %v1124 = vmul.f32 %v1123, %v1078
    %v1125 = vand.u32 2147483647, %v1078
    %vm1126 = vcmp.lt.f32.partialorder %v1125, 0.0004427343
    %v1127 = vsel %vm1126, %v1124, %v1121
    %v1128 = vadd.f32 %v1080, 1.0
    %v1129 = vlog2.pop %v1128
    %v1130 = vmul.f32 %v1129, 0.6931472
    %v1131 = vmul.f32 -0.5, %v1080
    %v1132 = vadd.f32 %v1131, 1.0
    %v1133 = vmul.f32 %v1132, %v1080
    %v1134 = vand.u32 2147483647, %v1080
    %vm1135 = vcmp.lt.f32.partialorder %v1134, 0.0004427343
    %v1136 = vsel %vm1135, %v1133, %v1130
    %v1137 = vadd.f32 %v1082, 1.0
    %v1138 = vlog2.pop %v1137
    %v1139 = vmul.f32 %v1138, 0.6931472
    %v1140 = vmul.f32 -0.5, %v1082
    %v1141 = vadd.f32 %v1140, 1.0
    %v1142 = vmul.f32 %v1141, %v1082
    %v1143 = vand.u32 2147483647, %v1082
    %vm1144 = vcmp.lt.f32.partialorder %v1143, 0.0004427343
    %v1145 = vsel %vm1144, %v1142, %v1139
    %v1146 = vadd.f32 %v1084, 1.0
    %v1147 = vlog2.pop %v1146
    %v1148 = vmul.f32 %v1147, 0.6931472
    %v1149 = vmul.f32 -0.5, %v1084
    %v1150 = vadd.f32 %v1149, 1.0
    %v1151 = vmul.f32 %v1150, %v1084
    %v1152 = vand.u32 2147483647, %v1084
    %vm1153 = vcmp.lt.f32.partialorder %v1152, 0.0004427343
    %v1154 = vsel %vm1153, %v1151, %v1148
    %v1155 = vadd.f32 %v1115, %v1127
    %v1156 = vadd.f32 %v1116, %v1136
    %v1157 = vadd.f32 %v1117, %v1145
    %v1158 = vadd.f32 %v1118, %v1154
    %v1160 = vlaneseq
    %v1161 = vshrl.u32 %v1160, 7
    %v1162 = vsub.s32 0, %v1161
    %v1163 = vrot.slane %v1068, %v1162
    %v1164 = vlaneseq
    %v1165 = vshrl.u32 %v1164, 7
    %v1166 = vsub.s32 2, %v1165
    %v1167 = vrot.slane %v1068, %v1166
    %v1168 = vlaneseq
    %v1169 = vshrl.u32 %v1168, 7
    %v1170 = vsub.s32 4, %v1169
    %v1171 = vrot.slane %v1068, %v1170
    %v1172 = vlaneseq
    %v1173 = vshrl.u32 %v1172, 7
    %v1174 = vsub.s32 6, %v1173
    %v1175 = vrot.slane %v1068, %v1174
    %v1180 = vlaneseq
    %v1181 = vshrl.u32 %v1180, 7
    %v1182 = vsub.s32 0, %v1181
    %v1183 = vrot.slane %v1163, %v1182
    %v1184 = vlaneseq
    %v1185 = vshrl.u32 %v1184, 7
    %v1186 = vsub.s32 0, %v1185
    %v1187 = vrot.slane %v1167, %v1186
    %v1188 = vlaneseq
    %v1189 = vshrl.u32 %v1188, 7
    %v1190 = vsub.s32 0, %v1189
    %v1191 = vrot.slane %v1171, %v1190
    %v1192 = vlaneseq
    %v1193 = vshrl.u32 %v1192, 7
    %v1194 = vsub.s32 0, %v1193
    %v1195 = vrot.slane %v1175, %v1194
    %v1196 = vmul.f32 %v1183, %v1155
    %v1197 = vmul.f32 %v1187, %v1156
    %v1198 = vmul.f32 %v1191, %v1157
    %v1199 = vmul.f32 %v1195, %v1158
    %v1200 = vadd.f32 %v1078, 1.0
    %v1201 = vadd.f32 %v1080, 1.0
    %v1202 = vadd.f32 %v1082, 1.0
    %v1203 = vadd.f32 %v1084, 1.0
    %v1204 = vrcp.pop %v1200
    %v1205 = vmul.f32 1.0, %v1204
    %v1206 = vrcp.pop %v1201
    %v1207 = vmul.f32 1.0, %v1206
    %v1208 = vrcp.pop %v1202
    %v1209 = vmul.f32 1.0, %v1208
    %v1210 = vrcp.pop %v1203
    %v1211 = vmul.f32 1.0, %v1210
    %vm1212 = vcmp.ge.f32.partialorder %v1061, 0.0
    %vm1213 = vcmp.ge.f32.partialorder %v1062, 0.0
    %vm1214 = vcmp.ge.f32.partialorder %v1063, 0.0
    %vm1215 = vcmp.ge.f32.partialorder %v1064, 0.0
    %v1216 = vmul.f32 %v1078, %v1205
    %v1217 = vmul.f32 %v1080, %v1207
    %v1218 = vmul.f32 %v1082, %v1209
    %v1219 = vmul.f32 %v1084, %v1211
    %v1220 = vsel %vm1212, %v1205, %v1216
    %v1221 = vsel %vm1213, %v1207, %v1217
    %v1222 = vsel %vm1214, %v1209, %v1218
    %v1223 = vsel %vm1215, %v1211, %v1219
    %v1224 = vmul.f32 %v1220, %v1183
    %v1225 = vmul.f32 %v1221, %v1187
    %v1226 = vmul.f32 %v1222, %v1191
    %v1227 = vmul.f32 %v1223, %v1195
    %v1232 = vcombine.low %v1224, %v1225
    %v1233 = vcombine.low %v1226, %v1227
    %v1235 = vunpack.c.l.s4 1983009808
    %v1236 = vunpack.c.0.s8 %v1235
    %v1237 = vlaneseq
    %v1238 = vshrl.u32 %v1237, 7
    %v1239 = vsub.s32 %v1236, %v1238
    %v1240 = vrot.slane %v1232, %v1239
    %v1242 = vunpack.c.l.s4 1983009808
    %v1243 = vunpack.c.0.s8 %v1242
    %v1244 = vlaneseq
    %v1245 = vshrl.u32 %v1244, 7
    %v1246 = vsub.s32 %v1243, %v1245
    %v1247 = vrot.slane %v1233, %v1246
    %v1248 = vcombine.low %v1240, %v1247
    %1250 = vst [vmem:[#allocation7] sm:$0xff] %v1248
    %vm1251 = vcmask 1040384
    %v1252 = vsel %vm1251, %v1196, 0.0
    %v1253 = vsel %vm1251, %v1197, 0.0
    %v1254 = vadd.f32 %v1252, %v1253
    %v1255 = vsel %vm1251, %v1198, 0.0
    %v1256 = vadd.f32 %v1254, %v1255
    %v1257 = vsel %vm1251, %v1199, 0.0
    %v1258 = vadd.f32 %v1256, %v1257
    %1259 = vadd.xlane.f32.xlu0 %v1258
    %v1260 = vpop.xlane.xlu0 %1259
    %v1261 = vrot.slane %v1260, 4
    %v1262 = vadd.f32 %v1260, %v1261
    %v1263 = vrot.slane %v1262, 2
    %v1264 = vadd.f32 %v1262, %v1263
    %v1265 = vrot.slane %v1264, 1
    %v1266 = vadd.f32 %v1264, %v1265
    %s1267 = vtos %v1266
    %v1272 = vrot.slane %v1196, 1
    %v1273 = vrot.slane %v1197, 1
    %v1274 = vrot.slane %v1198, 1
    %v1275 = vrot.slane %v1199, 1
    %v1280 = vsel %vm1251, %v1272, 0.0
    %v1281 = vsel %vm1251, %v1273, 0.0
    %v1282 = vadd.f32 %v1280, %v1281
    %v1283 = vsel %vm1251, %v1274, 0.0
    %v1284 = vadd.f32 %v1282, %v1283
    %v1285 = vsel %vm1251, %v1275, 0.0
    %v1286 = vadd.f32 %v1284, %v1285
    %1287 = vadd.xlane.f32.xlu0 %v1286
    %v1288 = vpop.xlane.xlu0 %1287
    %v1289 = vrot.slane %v1288, 4
    %v1290 = vadd.f32 %v1288, %v1289
    %v1291 = vrot.slane %v1290, 2
    %v1292 = vadd.f32 %v1290, %v1291
    %v1293 = vrot.slane %v1292, 1
    %v1294 = vadd.f32 %v1292, %v1293
    %s1295 = vtos %v1294
    %v1296 = vlaneseq
    %v1297 = vshrl.u32 %v1296, 7
    %vm1298 = vcmp.eq.s32.totalorder %v1297, 0
    %vm1299 = vcmp.eq.s32.totalorder %v1297, 1
    %v1300 = vstv %s1295
    %v1301 = vsel %vm1299, %v1300, 0.0
    %v1302 = vstv %s1267
    %v1303 = vsel %vm1298, %v1302, %v1301
    %1304 = vst [vmem:[#allocation8] sm:$0xff] %v1303
    // Predicated region
    $region26: #{tpu_custom_call.1} parent=1 // pred_check
      _
    $region27: #{tpu_custom_call.1} parent=1 // pred_check_branch
      %1306 = sbr.rel (0) target = $region29
    $region28: #{tpu_custom_call.1} parent=1 // pred_region
      %s1308 = ssub.s32 128, 128
      %1309 = vsyncadd [#allocation4], %s1308
      %s1311 = sshll.u32 [#allocation7], 4
      %s1312 = int_to_ptr.vmem [resolvable:$true] %s1311
      %1314 = dma.vmem_to_hbm [thread:$0]  %s1312, 128, %s4, [#allocation4]
    $region29: #{tpu_custom_call.1} parent=1 // pred_fallthru
      _
    // Predicated region
    $region30: #{tpu_custom_call.1} parent=1 // pred_check
      _
    $region31: #{tpu_custom_call.1} parent=1 // pred_check_branch
      %1316 = sbr.rel (0) target = $region33
    $region32: #{tpu_custom_call.1} parent=1 // pred_region
      %s1318 = ssub.s32 128, 128
      %1319 = vsyncadd [#allocation9], %s1318
      %s1321 = sshll.u32 [#allocation8], 4
      %s1322 = int_to_ptr.vmem [resolvable:$true] %s1321
      %1324 = dma.vmem_to_hbm [thread:$0]  %s1322, 128, %s5, [#allocation9]
    $region33: #{tpu_custom_call.1} parent=1 // pred_fallthru
      _
    // Predicated region
    $region34: #{tpu_custom_call.1} parent=1 // pred_check
      _
    $region35: #{tpu_custom_call.1} parent=1 // pred_check_branch
      %1326 = sbr.rel (0) target = $region37
    $region36: #{tpu_custom_call.1} parent=1 // pred_region
      %1327 = dma.done [#allocation4], 128
    $region37: #{tpu_custom_call.1} parent=1 // pred_fallthru
      _
    // Predicated region
    $region38: #{tpu_custom_call.1} parent=1 // pred_check
      _
    $region39: #{tpu_custom_call.1} parent=1 // pred_check_branch
      %1329 = sbr.rel (0) target = $region41
    $region40: #{tpu_custom_call.1} parent=1 // pred_region
      %1330 = dma.done [#allocation9], 128
    $region41: #{tpu_custom_call.1} parent=1 // pred_fallthru
      _
    %1331 = vsyncpa [#allocation3], 1
    %1332 = vsyncpa [#allocation6], 1
    %1333 = vsyncpa [#allocation4], 1
    %1334 = vsyncpa [#allocation9], 1

</llo_original>
